<compile_context>
chip_gen: v5e
topology: v5e:2x2
jax: 0.10.0
libtpu: 0.0.40
codegen_flags: <defaults>
</compile_context>

<pallas_src>
import functools

import jax
import jax.numpy as jnp
from jax.experimental import pallas as pl
from jax.experimental.pallas import tpu as pltpu


def _round_up(n: int, m: int) -> int:
    return ((n + m - 1) // m) * m


def _mlp_projector_kernel(x_ref, w1_ref, b1_ref, w2_ref, b2_ref, o_ref):
    # Fused: out = relu(x @ W1 + b1) @ W2 + b2
    # x arrives in its HBM dtype and is cast to bf16 in-register (VPU) right
    # before the first MXU pass; accumulation is f32.
    x = x_ref[...].astype(jnp.bfloat16)
    h = jnp.dot(x, w1_ref[...], preferred_element_type=jnp.float32)
    h = jnp.maximum(h + b1_ref[...], 0.0)           # bias + ReLU in f32
    # NOTE: the ReLU output is rounded to bf16 before feeding the second MXU
    # pass (intentional, documented precision tradeoff).
    h = h.astype(w2_ref.dtype)
    out = jnp.dot(h, w2_ref[...], preferred_element_type=jnp.float32)
    o_ref[...] = (out + b2_ref[...]).astype(o_ref.dtype)


def _pick_block_m(B: int, block_m, x_itemsize: int) -> int:
    """Batch tile: sublane-aligned, >=2 grid steps whenever B allows (v7x has
    2 TensorCores), growing with B to amortize per-step overhead on v5e/v6e."""
    sub = max(8, 32 // max(1, x_itemsize))          # 8 rows (f32) / 16 (bf16)
    if block_m is None:
        if B <= 128:
            block_m = 64        # 2 steps for 64 < B <= 128
        elif B <= 512:
            block_m = 128
        elif B <= 2048:
            block_m = 256
        else:
            block_m = 512       # large B: fewer steps, better MXU weight reuse
    else:
        block_m = _round_up(max(block_m, sub), sub)
    # If the whole batch fits in one tile, use a full-extent block (always a
    # legal block shape regardless of the (8,128) divisibility rule).
    return B if B <= block_m else block_m


@functools.partial(jax.jit, static_argnames=("block_m", "out_dtype"))
def projector_forward(x, w1, b1, w2, b2, *, block_m=None, out_dtype=None):
    """Pallas TPU forward for projector(type='mlp').

    x:  [B, feat_dim]
    w1: [feat_dim, hidden], b1: [hidden]   (weights stored [in, out] = PyTorch W.T)
    w2: [hidden, z_dim],    b2: [z_dim]
    returns [B, z_dim] in `out_dtype` (default: x.dtype)
    """
    B, F = x.shape
    H = w1.shape[1]
    Z = w2.shape[1]
    if out_dtype is None:
        out_dtype = x.dtype
    x_itemsize = jnp.dtype(x.dtype).itemsize
    out_itemsize = jnp.dtype(out_dtype).itemsize

    bm = _pick_block_m(B, block_m, x_itemsize)
    grid = (pl.cdiv(B, bm),)   # partial last block: OOB rows masked on writeback

    # Weights are small for this module (F*H + H*Z elements) -> bf16 and fully
    # VMEM-resident / single-buffered; biases kept in f32.
    # TODO(synk): when F*H*2 + H*Z*2 approaches ~24-32 MiB (per-TC budget on
    # v7x's 64 MiB VMEM; each core holds its own copy under "parallel"), switch
    # to an H-tiled "arbitrary" grid axis with a (bm, Z) f32 VMEM accumulator.
    w1_c = w1.astype(jnp.bfloat16)
    w2_c = w2.astype(jnp.bfloat16)
    b1_2d = b1.astype(jnp.float32).reshape(1, H)
    b2_2d = b2.astype(jnp.float32).reshape(1, Z)

    # VMEM budget: double-buffered x/out tiles + single-copy resident weights
    # + live intermediates (bf16 x copy, f32 & bf16 h, f32 out).
    need = (2 * bm * F * x_itemsize + 2 * bm * Z * out_itemsize
            + F * H * 2 + H * Z * 2 + (H + Z) * 4
            + bm * F * 2 + bm * H * (4 + 2) + bm * Z * 4)
    try:
        vmem_cap = int(pltpu.get_tpu_info().vmem_capacity_bytes)
    except Exception:
        vmem_cap = 64 << 20                       # conservative (v7x per-TC)
    vmem_ceiling = (vmem_cap * 4) // 5            # ~80% of physical VMEM
    vmem_limit = int(min(max(need + (8 << 20), 32 << 20), vmem_ceiling))

    cost = pl.CostEstimate(
        flops=2 * B * F * H + 2 * B * H * Z,
        transcendentals=0,
        bytes_accessed=(B * F * x_itemsize + F * H * 2 + H * Z * 2
                        + (H + Z) * 4 + B * Z * out_itemsize),
    )

    return pl.pallas_call(
        _mlp_projector_kernel,
        out_shape=jax.ShapeDtypeStruct((B, Z), out_dtype),
        grid=grid,
        in_specs=[
            pl.BlockSpec((bm, F), lambda i: (i, 0)),            # x tile (pipelined)
            pl.BlockSpec(memory_space=pltpu.MemorySpace.VMEM),  # W1 resident (single-buffered)
            pl.BlockSpec(memory_space=pltpu.MemorySpace.VMEM),  # b1 resident
            pl.BlockSpec(memory_space=pltpu.MemorySpace.VMEM),  # W2 resident
            pl.BlockSpec(memory_space=pltpu.MemorySpace.VMEM),  # b2 resident
        ],
        out_specs=pl.BlockSpec((bm, Z), lambda i: (i, 0)),      # lane-dense output
        compiler_params=pltpu.CompilerParams(
            dimension_semantics=("parallel",),
            vmem_limit_bytes=vmem_limit,
        ),
        cost_estimate=cost,
    )(x, w1_c, b1_2d, w2_c, b2_2d)


def init_projector_params(key, feat_dim=512, hidden=512, z_dim=128,
                          dtype=jnp.float32):
    """Deterministic init mimicking nn.Linear default (uniform +/- 1/sqrt(fan_in))."""
    k1, k2, k3, k4 = jax.random.split(key, 4)
    bound1 = 1.0 / jnp.sqrt(feat_dim)
    bound2 = 1.0 / jnp.sqrt(hidden)
    w1 = jax.random.uniform(k1, (feat_dim, hidden), dtype, -bound1, bound1)
    b1 = jax.random.uniform(k2, (hidden,), dtype, -bound1, bound1)
    w2 = jax.random.uniform(k3, (hidden, z_dim), dtype, -bound2, bound2)
    b2 = jax.random.uniform(k4, (z_dim,), dtype, -bound2, bound2)
    return w1, b1, w2, b2


if __name__ == "__main__":
    key = jax.random.PRNGKey(0)
    kx, kp = jax.random.split(key)

    # Module defaults: feat_dim=512 -> hidden 512 -> z_dim=128.
    # Ragged batch of 200 -> cdiv grid of 2 steps (128 + partial 72): exercises
    # megacore sharding (v7x) and the masked partial-block path.
    B, FEAT, HID, ZD = 200, 512, 512, 128
    x = jax.random.normal(kx, (B, FEAT), jnp.float32)
    w1, b1, w2, b2 = init_projector_params(kp, FEAT, HID, ZD)

    out = projector_forward(x, w1, b1, w2, b2)
    out = jax.block_until_ready(out)
    assert out.shape == (B, ZD) and out.dtype == jnp.float32

    # Reference with matching bf16 input/intermediate rounding, f32 math.
    xr = x.astype(jnp.bfloat16).astype(jnp.float32)
    w1r = w1.astype(jnp.bfloat16).astype(jnp.float32)
    w2r = w2.astype(jnp.bfloat16).astype(jnp.float32)
    h_ref = jnp.maximum(xr @ w1r + b1, 0.0).astype(jnp.bfloat16).astype(jnp.float32)
    ref = h_ref @ w2r + b2
    assert jnp.allclose(out, ref, atol=1e-2, rtol=1e-2), "mismatch vs reference"

    # Optional bf16 output path (halves output HBM writeback).
    out_bf16 = jax.block_until_ready(
        projector_forward(x, w1, b1, w2, b2, out_dtype=jnp.bfloat16))
    assert out_bf16.shape == (B, ZD) and out_bf16.dtype == jnp.bfloat16
    assert jnp.allclose(out_bf16.astype(jnp.float32), ref, atol=5e-2, rtol=5e-2)

    print("KERNEL_OK")
</pallas_src>

<mosaic_0001>
module attributes {stable_mosaic.version = 11 : i64} {
  func.func @_mlp_projector_kernel(%arg0: i32, %arg1: memref<128x512xf32, #tpu.memory_space<vmem>>, %arg2: memref<512x512xbf16, #tpu.memory_space<vmem>>, %arg3: memref<1x512xf32, #tpu.memory_space<vmem>>, %arg4: memref<512x128xbf16, #tpu.memory_space<vmem>>, %arg5: memref<1x128xf32, #tpu.memory_space<vmem>>, %arg6: memref<128x128xf32, #tpu.memory_space<vmem>>) attributes {dimension_semantics = [#tpu.dimension_semantics<parallel>], iteration_bounds = array<i64: 2>, scalar_prefetch = 0 : i64, scratch_operands = 0 : i64, tpu.core_type = #tpu.core_type<tc>, window_params = [{transform_indices = @transform_0, window_bounds = array<i64: 128, 512>}, {pipeline_mode = #tpu.pipeline_mode<synchronous>, transform_indices = @transform_1, window_bounds = array<i64: 512, 512>}, {pipeline_mode = #tpu.pipeline_mode<synchronous>, transform_indices = @transform_2, window_bounds = array<i64: 1, 512>}, {pipeline_mode = #tpu.pipeline_mode<synchronous>, transform_indices = @transform_3, window_bounds = array<i64: 512, 128>}, {pipeline_mode = #tpu.pipeline_mode<synchronous>, transform_indices = @transform_4, window_bounds = array<i64: 1, 128>}, {transform_indices = @transform_5, window_bounds = array<i64: 128, 128>}]} {
    %c0 = arith.constant 0 : index
    %c0_0 = arith.constant 0 : index
    %0 = vector.load %arg1[%c0, %c0_0] : memref<128x512xf32, #tpu.memory_space<vmem>>, vector<128x512xf32>
    %1 = arith.truncf %0 : vector<128x512xf32> to vector<128x512xbf16>
    %c0_1 = arith.constant 0 : index
    %c0_2 = arith.constant 0 : index
    %2 = vector.load %arg2[%c0_1, %c0_2] : memref<512x512xbf16, #tpu.memory_space<vmem>>, vector<512x512xbf16>
    %cst = arith.constant dense<0.000000e+00> : vector<128x512xf32>
    %3 = tpu.matmul %1, %2, %cst {dimension_numbers = #tpu.dot_dimension_numbers<[1], [0], [0], [1], [0, 0, 1, 1], [], []>} : vector<128x512xbf16>, vector<512x512xbf16>, vector<128x512xf32> -> vector<128x512xf32>
    %c0_3 = arith.constant 0 : index
    %c0_4 = arith.constant 0 : index
    %4 = vector.load %arg3[%c0_3, %c0_4] : memref<1x512xf32, #tpu.memory_space<vmem>>, vector<1x512xf32>
    %5 = vector.broadcast %4 : vector<1x512xf32> to vector<128x512xf32>
    %6 = arith.addf %3, %5 : vector<128x512xf32>
    %cst_5 = arith.constant 0.000000e+00 : f32
    %7 = vector.broadcast %cst_5 : f32 to vector<128x512xf32>
    %8 = arith.maximumf %6, %7 : vector<128x512xf32>
    %9 = arith.truncf %8 : vector<128x512xf32> to vector<128x512xbf16>
    %c0_6 = arith.constant 0 : index
    %c0_7 = arith.constant 0 : index
    %10 = vector.load %arg4[%c0_6, %c0_7] : memref<512x128xbf16, #tpu.memory_space<vmem>>, vector<512x128xbf16>
    %cst_8 = arith.constant dense<0.000000e+00> : vector<128x128xf32>
    %11 = tpu.matmul %9, %10, %cst_8 {dimension_numbers = #tpu.dot_dimension_numbers<[1], [0], [0], [1], [0, 0, 1, 1], [], []>} : vector<128x512xbf16>, vector<512x128xbf16>, vector<128x128xf32> -> vector<128x128xf32>
    %c0_9 = arith.constant 0 : index
    %c0_10 = arith.constant 0 : index
    %12 = vector.load %arg5[%c0_9, %c0_10] : memref<1x128xf32, #tpu.memory_space<vmem>>, vector<1x128xf32>
    %13 = vector.broadcast %12 : vector<1x128xf32> to vector<128x128xf32>
    %14 = arith.addf %11, %13 : vector<128x128xf32>
    %c0_11 = arith.constant 0 : index
    %c0_12 = arith.constant 0 : index
    %15 = vector.load %arg6[%c0_11, %c0_12] : memref<128x128xf32, #tpu.memory_space<vmem>>, vector<128x128xf32>
    tpu.vector_store %arg6[%c0_11, %c0_12], %14 {strides = array<i32>} : memref<128x128xf32, #tpu.memory_space<vmem>>, vector<128x128xf32>,
    return
  }
  func.func @transform_0(%arg0: i32) -> (i32, i32) {
    %c0_i32 = arith.constant 0 : i32
    %c0_i32_0 = arith.constant 0 : i32
    return %arg0, %c0_i32 : i32, i32
  }
  func.func @transform_1(%arg0: i32) -> (i32, i32) {
    %c0_i32 = arith.constant 0 : i32
    %c0_i32_0 = arith.constant 0 : i32
    %c0_i32_1 = arith.constant 0 : i32
    return %c0_i32, %c0_i32_0 : i32, i32
  }
  func.func @transform_2(%arg0: i32) -> (i32, i32) {
    %c0_i32 = arith.constant 0 : i32
    %c0_i32_0 = arith.constant 0 : i32
    %c0_i32_1 = arith.constant 0 : i32
    return %c0_i32, %c0_i32_0 : i32, i32
  }
  func.func @transform_3(%arg0: i32) -> (i32, i32) {
    %c0_i32 = arith.constant 0 : i32
    %c0_i32_0 = arith.constant 0 : i32
    %c0_i32_1 = arith.constant 0 : i32
    return %c0_i32, %c0_i32_0 : i32, i32
  }
  func.func @transform_4(%arg0: i32) -> (i32, i32) {
    %c0_i32 = arith.constant 0 : i32
    %c0_i32_0 = arith.constant 0 : i32
    %c0_i32_1 = arith.constant 0 : i32
    return %c0_i32, %c0_i32_0 : i32, i32
  }
  func.func @transform_5(%arg0: i32) -> (i32, i32) {
    %c0_i32 = arith.constant 0 : i32
    %c0_i32_0 = arith.constant 0 : i32
    return %arg0, %c0_i32 : i32, i32
  }
}

</mosaic_0001>

<llo_original>
// kernel: projector_forward.1
$region0: #{projector_forward.1}
  #allocation0 [shape = 'u32[]', space=smem, size = 0x4, offset = 0x4, fixed_abs, tag = 'smem constant byte address 0x4 - core index']
  #allocation1 [shape = 'u32[72,128]{1,0:T(1,128)}', space=vmem, size = 0x9000, scoped, tag = 'internal scratch']
  %s0 = inlined_call_operand.vmem [shape: f32[200,512], index: 0, kind: input, shape index: {}]
  %s1 = inlined_call_operand.vmem [shape: bf16[512,512], index: 1, kind: input, shape index: {}]
  %s2 = inlined_call_operand.vmem [shape: f32[1,512], index: 2, kind: input, shape index: {}]
  %s3 = inlined_call_operand.vmem [shape: bf16[512,128], index: 3, kind: input, shape index: {}]
  %s4 = inlined_call_operand.vmem [shape: f32[1,128], index: 4, kind: input, shape index: {}]
  %s5 = inlined_call_operand.hbm [shape: f32[200,128], index: 5, kind: output, shape index: {}]
  %s6 = sld [smem:[#allocation0]]
  $region53: #{projector_forward.1} parent=0
    _
  %s8 = ssub.s32 1, %s6
  %s9 = scalar_select 0, %s8, %s6
  $region1: #{projector_forward.1} parent=0
    #allocation2 [shape = 'u8[131072]{0}', space=vmem, size = 0x20000, scoped, tag = 'output window, operand 0']
    #allocation3 [shape = 's32[2]{0}', space=sflag, size = 0x8, scoped, tag = 'scoped memory for projector_forward.1']
    %10 = vsyncpa [#allocation3], 0
    %s11 = scalar_lea.sflag [#allocation3], 1
    %12 = vsyncpa %s11, 0
    loop: start=0, step=1, limit=4
    $region2: #{projector_forward.1} parent=1 // loop_pre_header
      _
    $region3: #{projector_forward.1} parent=1 // loop_header
      %s14 = sphi 0, %s18
      %p15 = scmp.ge.s32.totalorder %s14, 4
      %s24 = sphi 0, %s26
      %s27 = sphi 0, %s24
      %s28 = sphi 0, %s27
      %s44 = sphi 0, %s28
      %s48 = sphi 0, %s48
      %s50 = sphi 0, %s48
      %s51 = sphi 0, %s50
      %s65 = sphi 0, %s51
      %s69 = sphi 0, %s69
      %s71 = sphi 0, %s69
      %s72 = sphi 0, %s71
      %s86 = sphi 0, %s72
      %s90 = sphi 0, %s90
      %s92 = sphi 0, %s90
      %s93 = sphi 0, %s92
      %s107 = sphi 0, %s93
      %s111 = sphi 0, %s111
      %s113 = sphi 0, %s111
      %s114 = sphi 0, %s113
      %s128 = sphi 0, %s114
      %s134 = sphi 0, %s136
      %s137 = sphi 0, %s134
      %s138 = sphi 0, %s137
      %s154 = sphi 0, %s138
    $region4: #{projector_forward.1} parent=1 // loop_header_branch
      %17 = sbr.rel (%p15) target = $region8
    $region5: #{projector_forward.1} parent=1 // loop_body
      %s19 = ssub.s32 %s14, 1
      %s20 = ssub.s32 %s14, 2
      %s21 = sadd.s32 %s14, 1
      %s22 = ssub.s32 %s14, %s21
      %p23 = scmp.eq.s32.totalorder %s22, 0
      %s25 = sadd.s32 %s24, 1
      %s26 = scalar_select %p23, %s24, %s25
      %p29 = pneg %p23
      %p30 = scmp.eq.s32.totalorder %s14, 1
      %p31 = por %p29, %p30
      %p32 = scmp.ne.s32.totalorder %s24, %s27
      %p33 = scmp.eq.s32.totalorder %s14, 0
      %p34 = por %p32, %p33
      %p35 = scmp.ne.s32.totalorder %s24, %s27
      %p36 = scmp.eq.s32.totalorder %s19, 1
      %p37 = por %p35, %p36
      %p38 = scmp.ne.s32.totalorder %s27, %s28
      %p39 = scmp.eq.s32.totalorder %s19, 0
      %p40 = por %p38, %p39
      %p41 = scmp.ne.s32.totalorder %s27, %s28
      %p42 = scmp.eq.s32.totalorder %s20, 1
      %p43 = por %p41, %p42
      %p45 = scmp.ne.s32.totalorder %s28, %s44
      %p46 = scmp.eq.s32.totalorder %s20, 0
      %p47 = por %p45, %p46
      %s49 = sadd.s32 %s48, 1
      %p52 = scmp.eq.s32.totalorder %s14, 1
      %p53 = scmp.ne.s32.totalorder %s48, %s50
      %p54 = scmp.eq.s32.totalorder %s14, 0
      %p55 = por %p53, %p54
      %p56 = scmp.ne.s32.totalorder %s48, %s50
      %p57 = scmp.eq.s32.totalorder %s19, 1
      %p58 = por %p56, %p57
      %p59 = scmp.ne.s32.totalorder %s50, %s51
      %p60 = scmp.eq.s32.totalorder %s19, 0
      %p61 = por %p59, %p60
      %p62 = scmp.ne.s32.totalorder %s50, %s51
      %p63 = scmp.eq.s32.totalorder %s20, 1
      %p64 = por %p62, %p63
      %p66 = scmp.ne.s32.totalorder %s51, %s65
      %p67 = scmp.eq.s32.totalorder %s20, 0
      %p68 = por %p66, %p67
      %s70 = sadd.s32 %s69, 1
      %p73 = scmp.eq.s32.totalorder %s14, 1
      %p74 = scmp.ne.s32.totalorder %s69, %s71
      %p75 = scmp.eq.s32.totalorder %s14, 0
      %p76 = por %p74, %p75
      %p77 = scmp.ne.s32.totalorder %s69, %s71
      %p78 = scmp.eq.s32.totalorder %s19, 1
      %p79 = por %p77, %p78
      %p80 = scmp.ne.s32.totalorder %s71, %s72
      %p81 = scmp.eq.s32.totalorder %s19, 0
      %p82 = por %p80, %p81
      %p83 = scmp.ne.s32.totalorder %s71, %s72
      %p84 = scmp.eq.s32.totalorder %s20, 1
      %p85 = por %p83, %p84
      %p87 = scmp.ne.s32.totalorder %s72, %s86
      %p88 = scmp.eq.s32.totalorder %s20, 0
      %p89 = por %p87, %p88
      %s91 = sadd.s32 %s90, 1
      %p94 = scmp.eq.s32.totalorder %s14, 1
      %p95 = scmp.ne.s32.totalorder %s90, %s92
      %p96 = scmp.eq.s32.totalorder %s14, 0
      %p97 = por %p95, %p96
      %p98 = scmp.ne.s32.totalorder %s90, %s92
      %p99 = scmp.eq.s32.totalorder %s19, 1
      %p100 = por %p98, %p99
      %p101 = scmp.ne.s32.totalorder %s92, %s93
      %p102 = scmp.eq.s32.totalorder %s19, 0
      %p103 = por %p101, %p102
      %p104 = scmp.ne.s32.totalorder %s92, %s93
      %p105 = scmp.eq.s32.totalorder %s20, 1
      %p106 = por %p104, %p105
      %p108 = scmp.ne.s32.totalorder %s93, %s107
      %p109 = scmp.eq.s32.totalorder %s20, 0
      %p110 = por %p108, %p109
      %s112 = sadd.s32 %s111, 1
      %p115 = scmp.eq.s32.totalorder %s14, 1
      %p116 = scmp.ne.s32.totalorder %s111, %s113
      %p117 = scmp.eq.s32.totalorder %s14, 0
      %p118 = por %p116, %p117
      %p119 = scmp.ne.s32.totalorder %s111, %s113
      %p120 = scmp.eq.s32.totalorder %s19, 1
      %p121 = por %p119, %p120
      %p122 = scmp.ne.s32.totalorder %s113, %s114
      %p123 = scmp.eq.s32.totalorder %s19, 0
      %p124 = por %p122, %p123
      %p125 = scmp.ne.s32.totalorder %s113, %s114
      %p126 = scmp.eq.s32.totalorder %s20, 1
      %p127 = por %p125, %p126
      %p129 = scmp.ne.s32.totalorder %s114, %s128
      %p130 = scmp.eq.s32.totalorder %s20, 0
      %p131 = por %p129, %p130
      %s132 = ssub.s32 %s14, %s21
      %p133 = scmp.eq.s32.totalorder %s132, 0
      %s135 = sadd.s32 %s134, 1
      %s136 = scalar_select %p133, %s134, %s135
      %p139 = pneg %p133
      %p140 = scmp.eq.s32.totalorder %s14, 1
      %p141 = por %p139, %p140
      %p142 = scmp.ne.s32.totalorder %s134, %s137
      %p143 = scmp.eq.s32.totalorder %s14, 0
      %p144 = por %p142, %p143
      %p145 = scmp.ne.s32.totalorder %s134, %s137
      %p146 = scmp.eq.s32.totalorder %s19, 1
      %p147 = por %p145, %p146
      %p148 = scmp.ne.s32.totalorder %s137, %s138
      %p149 = scmp.eq.s32.totalorder %s19, 0
      %p150 = por %p148, %p149
      %p151 = scmp.ne.s32.totalorder %s137, %s138
      %p152 = scmp.eq.s32.totalorder %s20, 1
      %p153 = por %p151, %p152
      %p155 = scmp.ne.s32.totalorder %s138, %s154
      %p156 = scmp.eq.s32.totalorder %s20, 0
      %p157 = por %p155, %p156
      %p158 = scmp.le.s32.totalorder 1, %s14
      %p159 = scmp.lt.s32.totalorder %s14, 3
      %p160 = pnand %p158, %p159
      %p161 = pneg %p160
      // Predicated region
      $region9: #{projector_forward.1} parent=5 // pred_check
        _
      $region10: #{projector_forward.1} parent=5 // pred_check_branch
        %163 = sbr.rel (%p160) target = $region12
      $region11: #{projector_forward.1} parent=5 // pred_region
        %s164 = ssub.s32 %s14, 1
        // Predicated region
        $region13: #{projector_forward.1} parent=11 // pred_check
          %p165 = pneg %p61
        $region14: #{projector_forward.1} parent=11 // pred_check_branch
          %167 = sbr.rel (%p165) target = $region16
        $region15: #{projector_forward.1} parent=11 // pred_region
          _
        $region16: #{projector_forward.1} parent=11 // pred_fallthru
          _
        // Predicated region
        $region17: #{projector_forward.1} parent=11 // pred_check
          %p168 = pneg %p82
        $region18: #{projector_forward.1} parent=11 // pred_check_branch
          %170 = sbr.rel (%p168) target = $region20
        $region19: #{projector_forward.1} parent=11 // pred_region
          _
        $region20: #{projector_forward.1} parent=11 // pred_fallthru
          _
        // Predicated region
        $region21: #{projector_forward.1} parent=11 // pred_check
          %p171 = pneg %p103
        $region22: #{projector_forward.1} parent=11 // pred_check_branch
          %173 = sbr.rel (%p171) target = $region24
        $region23: #{projector_forward.1} parent=11 // pred_region
          _
        $region24: #{projector_forward.1} parent=11 // pred_fallthru
          _
        // Predicated region
        $region25: #{projector_forward.1} parent=11 // pred_check
          %p174 = pneg %p124
        $region26: #{projector_forward.1} parent=11 // pred_check_branch
          %176 = sbr.rel (%p174) target = $region28
        $region27: #{projector_forward.1} parent=11 // pred_region
          _
        $region28: #{projector_forward.1} parent=11 // pred_fallthru
          _
      $region12: #{projector_forward.1} parent=5 // pred_fallthru
        _
      %p177 = scmp.lt.s32.totalorder %s14, 2
      // Predicated region
      $region29: #{projector_forward.1} parent=5 // pred_check
        %p178 = pneg %p177
      $region30: #{projector_forward.1} parent=5 // pred_check_branch
        %180 = sbr.rel (%p178) target = $region32
      $region31: #{projector_forward.1} parent=5 // pred_region
        // Predicated region
        $region33: #{projector_forward.1} parent=31 // pred_check
          %p181 = pneg %p34
        $region34: #{projector_forward.1} parent=31 // pred_check_branch
          %183 = sbr.rel (%p181) target = $region36
        $region35: #{projector_forward.1} parent=31 // pred_region
          %s184 = smul.u32 16, %s14
          %s185 = ssub.s32 25, %s184
          %p186 = scmp.lt.s32.totalorder %s185, 16
          %s187 = scalar_select %p186, %s185, 16
          %s188 = smul.u32 8, %s187
          %s189 = smul.u32 %s188, 4
          %p190 = scmp.lt.s32.totalorder %s184, 24
          %s191 = scalar_select %p190, %s184, 24
          %s192 = smul.addr %s191, 4
          %s193 = smul.addr %s192, 8
          %s194 = scalar_lea.vmem %s0, %s193
          %s195 = smul.u32 16, %s14
          %s196 = ssub.s32 25, %s195
          %p197 = scmp.lt.s32.totalorder %s196, 16
          %s198 = scalar_select %p197, %s196, 16
          %s199 = smul.u32 8, %s198
          %s200 = smul.u32 %s199, 4
        $region36: #{projector_forward.1} parent=31 // pred_fallthru
          _
      $region32: #{projector_forward.1} parent=5 // pred_fallthru
        _
      %p201 = scmp.le.s32.totalorder 1, %s14
      %p202 = scmp.lt.s32.totalorder %s14, 3
      %p203 = pnand %p201, %p202
      %p204 = pneg %p203
      // Predicated region
      $region37: #{projector_forward.1} parent=5 // pred_check
        _
      $region38: #{projector_forward.1} parent=5 // pred_check_branch
        %206 = sbr.rel (%p203) target = $region40
      $region39: #{projector_forward.1} parent=5 // pred_region
        %s207 = ssub.s32 %s14, 1
        %s208 = smul.u32 16, %s19
        %s209 = ssub.s32 25, %s208
        %p210 = scmp.lt.s32.totalorder %s209, 16
        %s211 = scalar_select %p210, %s209, 16
        %s212 = smul.u32 8, %s211
        %s213 = smul.u32 %s212, 4
        %p214 = scmp.lt.s32.totalorder %s208, 24
        %s215 = scalar_select %p214, %s208, 24
        %s216 = smul.addr %s215, 4
        %s217 = smul.addr %s216, 8
        %s218 = scalar_lea.vmem %s0, %s217
        %p219 = pneg %p40
        %p220 = pneg %p37
        %p221 = pneg %p61
        %p222 = pneg %p58
        %p223 = pneg %p82
        %p224 = pneg %p79
        %p225 = pneg %p103
        %p226 = pneg %p100
        %p227 = pneg %p124
        %p228 = pneg %p121
        %p229 = pneg %p150
        %p230 = pneg %p147
        %s231 = sand.u32 %s137, 1
        %s232 = scalar_lea.sflag [#allocation3], %s231
        %s233 = sand.u32 %s137, 1
        %s234 = smul.addr %s233, 128
        %s235 = scalar_lea.vmem [#allocation2], %s234
        %s236 = smul.u32 16, %s19
        %s237 = ssub.s32 25, %s236
        %p238 = scmp.lt.s32.totalorder %s237, 16
        %s239 = scalar_select %p238, %s237, 16
        %s240 = smul.u32 8, %s239
        %s241 = smul.u32 %s240, 4
        %p242 = scmp.lt.s32.totalorder %s236, 24
        %s243 = scalar_select %p242, %s236, 24
        %s244 = smul.addr %s243, 4
        %s245 = smul.addr %s244, 8
        %s246 = scalar_lea.vmem %s0, %s245
        %s247 = smul.u32 16, %s19
        %s248 = ssub.s32 25, %s247
        %p249 = scmp.lt.s32.totalorder %s248, 16
        %s250 = scalar_select %p249, %s248, 16
        %s251 = smul.u32 8, %s250
        %s252 = smul.u32 %s251, 4
        %s253 = smul.u32 16, %s19
        %s254 = ssub.s32 25, %s253
        %p255 = scmp.lt.s32.totalorder %s254, 16
        %s256 = scalar_select %p255, %s254, 16
        %s257 = smul.u32 8, %s256
        %v258 = vld [vmem:[%s246] sm:$0xff]
        %v259 = vld [vmem:[%s246 + $0x8] sm:$0xff]
        %v260 = vld [vmem:[%s246 + $0x10] sm:$0xff]
        %v261 = vld [vmem:[%s246 + $0x18] sm:$0xff]
        %v262 = vld [vmem:[%s246 + $0x20] sm:$0xff]
        %v263 = vld [vmem:[%s246 + $0x28] sm:$0xff]
        %v264 = vld [vmem:[%s246 + $0x30] sm:$0xff]
        %v265 = vld [vmem:[%s246 + $0x38] sm:$0xff]
        %v266 = vld [vmem:[%s246 + $0x40] sm:$0xff]
        %v267 = vld [vmem:[%s246 + $0x48] sm:$0xff]
        %v268 = vld [vmem:[%s246 + $0x50] sm:$0xff]
        %v269 = vld [vmem:[%s246 + $0x58] sm:$0xff]
        %v270 = vld [vmem:[%s246 + $0x60] sm:$0xff]
        %v271 = vld [vmem:[%s246 + $0x68] sm:$0xff]
        %v272 = vld [vmem:[%s246 + $0x70] sm:$0xff]
        %v273 = vld [vmem:[%s246 + $0x78] sm:$0xff]
        %v274 = vld [vmem:[%s246 + $0x80] sm:$0xff]
        %v275 = vld [vmem:[%s246 + $0x88] sm:$0xff]
        %v276 = vld [vmem:[%s246 + $0x90] sm:$0xff]
        %v277 = vld [vmem:[%s246 + $0x98] sm:$0xff]
        %v278 = vld [vmem:[%s246 + $0xa0] sm:$0xff]
        %v279 = vld [vmem:[%s246 + $0xa8] sm:$0xff]
        %v280 = vld [vmem:[%s246 + $0xb0] sm:$0xff]
        %v281 = vld [vmem:[%s246 + $0xb8] sm:$0xff]
        %v282 = vld [vmem:[%s246 + $0xc0] sm:$0xff]
        %v283 = vld [vmem:[%s246 + $0xc8] sm:$0xff]
        %v284 = vld [vmem:[%s246 + $0xd0] sm:$0xff]
        %v285 = vld [vmem:[%s246 + $0xd8] sm:$0xff]
        %v286 = vld [vmem:[%s246 + $0xe0] sm:$0xff]
        %v287 = vld [vmem:[%s246 + $0xe8] sm:$0xff]
        %v288 = vld [vmem:[%s246 + $0xf0] sm:$0xff]
        %v289 = vld [vmem:[%s246 + $0xf8] sm:$0xff]
        %v290 = vld [vmem:[%s246 + $0x100] sm:$0xff]
        %v291 = vld [vmem:[%s246 + $0x108] sm:$0xff]
        %v292 = vld [vmem:[%s246 + $0x110] sm:$0xff]
        %v293 = vld [vmem:[%s246 + $0x118] sm:$0xff]
        %v294 = vld [vmem:[%s246 + $0x120] sm:$0xff]
        %v295 = vld [vmem:[%s246 + $0x128] sm:$0xff]
        %v296 = vld [vmem:[%s246 + $0x130] sm:$0xff]
        %v297 = vld [vmem:[%s246 + $0x138] sm:$0xff]
        %v298 = vld [vmem:[%s246 + $0x140] sm:$0xff]
        %v299 = vld [vmem:[%s246 + $0x148] sm:$0xff]
        %v300 = vld [vmem:[%s246 + $0x150] sm:$0xff]
        %v301 = vld [vmem:[%s246 + $0x158] sm:$0xff]
        %v302 = vld [vmem:[%s246 + $0x160] sm:$0xff]
        %v303 = vld [vmem:[%s246 + $0x168] sm:$0xff]
        %v304 = vld [vmem:[%s246 + $0x170] sm:$0xff]
        %v305 = vld [vmem:[%s246 + $0x178] sm:$0xff]
        %v306 = vld [vmem:[%s246 + $0x180] sm:$0xff]
        %v307 = vld [vmem:[%s246 + $0x188] sm:$0xff]
        %v308 = vld [vmem:[%s246 + $0x190] sm:$0xff]
        %v309 = vld [vmem:[%s246 + $0x198] sm:$0xff]
        %v310 = vld [vmem:[%s246 + $0x1a0] sm:$0xff]
        %v311 = vld [vmem:[%s246 + $0x1a8] sm:$0xff]
        %v312 = vld [vmem:[%s246 + $0x1b0] sm:$0xff]
        %v313 = vld [vmem:[%s246 + $0x1b8] sm:$0xff]
        %v314 = vld [vmem:[%s246 + $0x1c0] sm:$0xff]
        %v315 = vld [vmem:[%s246 + $0x1c8] sm:$0xff]
        %v316 = vld [vmem:[%s246 + $0x1d0] sm:$0xff]
        %v317 = vld [vmem:[%s246 + $0x1d8] sm:$0xff]
        %v318 = vld [vmem:[%s246 + $0x1e0] sm:$0xff]
        %v319 = vld [vmem:[%s246 + $0x1e8] sm:$0xff]
        %v320 = vld [vmem:[%s246 + $0x1f0] sm:$0xff]
        %v321 = vld [vmem:[%s246 + $0x1f8] sm:$0xff]
        %v322 = vpack.c.bf16 %v262, %v258
        %v323 = vpack.c.bf16 %v263, %v259
        %v324 = vpack.c.bf16 %v264, %v260
        %v325 = vpack.c.bf16 %v265, %v261
        %v326 = vpack.c.bf16 %v270, %v266
        %v327 = vpack.c.bf16 %v271, %v267
        %v328 = vpack.c.bf16 %v272, %v268
        %v329 = vpack.c.bf16 %v273, %v269
        %v330 = vpack.c.bf16 %v278, %v274
        %v331 = vpack.c.bf16 %v279, %v275
        %v332 = vpack.c.bf16 %v280, %v276
        %v333 = vpack.c.bf16 %v281, %v277
        %v334 = vpack.c.bf16 %v286, %v282
        %v335 = vpack.c.bf16 %v287, %v283
        %v336 = vpack.c.bf16 %v288, %v284
        %v337 = vpack.c.bf16 %v289, %v285
        %v338 = vpack.c.bf16 %v294, %v290
        %v339 = vpack.c.bf16 %v295, %v291
        %v340 = vpack.c.bf16 %v296, %v292
        %v341 = vpack.c.bf16 %v297, %v293
        %v342 = vpack.c.bf16 %v302, %v298
        %v343 = vpack.c.bf16 %v303, %v299
        %v344 = vpack.c.bf16 %v304, %v300
        %v345 = vpack.c.bf16 %v305, %v301
        %v346 = vpack.c.bf16 %v310, %v306
        %v347 = vpack.c.bf16 %v311, %v307
        %v348 = vpack.c.bf16 %v312, %v308
        %v349 = vpack.c.bf16 %v313, %v309
        %v350 = vpack.c.bf16 %v318, %v314
        %v351 = vpack.c.bf16 %v319, %v315
        %v352 = vpack.c.bf16 %v320, %v316
        %v353 = vpack.c.bf16 %v321, %v317
        %v354 = vld [vmem:[%s1] sm:$0xff]
        %v355 = vld [vmem:[%s1 + $0x8] sm:$0xff]
        %v356 = vld [vmem:[%s1 + $0x10] sm:$0xff]
        %v357 = vld [vmem:[%s1 + $0x18] sm:$0xff]
        %v358 = vld [vmem:[%s1 + $0x20] sm:$0xff]
        %v359 = vld [vmem:[%s1 + $0x28] sm:$0xff]
        %v360 = vld [vmem:[%s1 + $0x30] sm:$0xff]
        %v361 = vld [vmem:[%s1 + $0x38] sm:$0xff]
        %v362 = vld [vmem:[%s1 + $0x40] sm:$0xff]
        %v363 = vld [vmem:[%s1 + $0x48] sm:$0xff]
        %v364 = vld [vmem:[%s1 + $0x50] sm:$0xff]
        %v365 = vld [vmem:[%s1 + $0x58] sm:$0xff]
        %v366 = vld [vmem:[%s1 + $0x60] sm:$0xff]
        %v367 = vld [vmem:[%s1 + $0x68] sm:$0xff]
        %v368 = vld [vmem:[%s1 + $0x70] sm:$0xff]
        %v369 = vld [vmem:[%s1 + $0x78] sm:$0xff]
        %v370 = vld [vmem:[%s1 + $0x80] sm:$0xff]
        %v371 = vld [vmem:[%s1 + $0x88] sm:$0xff]
        %v372 = vld [vmem:[%s1 + $0x90] sm:$0xff]
        %v373 = vld [vmem:[%s1 + $0x98] sm:$0xff]
        %v374 = vld [vmem:[%s1 + $0xa0] sm:$0xff]
        %v375 = vld [vmem:[%s1 + $0xa8] sm:$0xff]
        %v376 = vld [vmem:[%s1 + $0xb0] sm:$0xff]
        %v377 = vld [vmem:[%s1 + $0xb8] sm:$0xff]
        %v378 = vld [vmem:[%s1 + $0xc0] sm:$0xff]
        %v379 = vld [vmem:[%s1 + $0xc8] sm:$0xff]
        %v380 = vld [vmem:[%s1 + $0xd0] sm:$0xff]
        %v381 = vld [vmem:[%s1 + $0xd8] sm:$0xff]
        %v382 = vld [vmem:[%s1 + $0xe0] sm:$0xff]
        %v383 = vld [vmem:[%s1 + $0xe8] sm:$0xff]
        %v384 = vld [vmem:[%s1 + $0xf0] sm:$0xff]
        %v385 = vld [vmem:[%s1 + $0xf8] sm:$0xff]
        %v386 = vld [vmem:[%s1 + $0x100] sm:$0xff]
        %v387 = vld [vmem:[%s1 + $0x108] sm:$0xff]
        %v388 = vld [vmem:[%s1 + $0x110] sm:$0xff]
        %v389 = vld [vmem:[%s1 + $0x118] sm:$0xff]
        %v390 = vld [vmem:[%s1 + $0x120] sm:$0xff]
        %v391 = vld [vmem:[%s1 + $0x128] sm:$0xff]
        %v392 = vld [vmem:[%s1 + $0x130] sm:$0xff]
        %v393 = vld [vmem:[%s1 + $0x138] sm:$0xff]
        %v394 = vld [vmem:[%s1 + $0x140] sm:$0xff]
        %v395 = vld [vmem:[%s1 + $0x148] sm:$0xff]
        %v396 = vld [vmem:[%s1 + $0x150] sm:$0xff]
        %v397 = vld [vmem:[%s1 + $0x158] sm:$0xff]
        %v398 = vld [vmem:[%s1 + $0x160] sm:$0xff]
        %v399 = vld [vmem:[%s1 + $0x168] sm:$0xff]
        %v400 = vld [vmem:[%s1 + $0x170] sm:$0xff]
        %v401 = vld [vmem:[%s1 + $0x178] sm:$0xff]
        %v402 = vld [vmem:[%s1 + $0x180] sm:$0xff]
        %v403 = vld [vmem:[%s1 + $0x188] sm:$0xff]
        %v404 = vld [vmem:[%s1 + $0x190] sm:$0xff]
        %v405 = vld [vmem:[%s1 + $0x198] sm:$0xff]
        %v406 = vld [vmem:[%s1 + $0x1a0] sm:$0xff]
        %v407 = vld [vmem:[%s1 + $0x1a8] sm:$0xff]
        %v408 = vld [vmem:[%s1 + $0x1b0] sm:$0xff]
        %v409 = vld [vmem:[%s1 + $0x1b8] sm:$0xff]
        %v410 = vld [vmem:[%s1 + $0x1c0] sm:$0xff]
        %v411 = vld [vmem:[%s1 + $0x1c8] sm:$0xff]
        %v412 = vld [vmem:[%s1 + $0x1d0] sm:$0xff]
        %v413 = vld [vmem:[%s1 + $0x1d8] sm:$0xff]
        %v414 = vld [vmem:[%s1 + $0x1e0] sm:$0xff]
        %v415 = vld [vmem:[%s1 + $0x1e8] sm:$0xff]
        %v416 = vld [vmem:[%s1 + $0x1f0] sm:$0xff]
        %v417 = vld [vmem:[%s1 + $0x1f8] sm:$0xff]
        %v418 = vld [vmem:[%s1 + $0x200] sm:$0xff]
        %v419 = vld [vmem:[%s1 + $0x208] sm:$0xff]
        %v420 = vld [vmem:[%s1 + $0x210] sm:$0xff]
        %v421 = vld [vmem:[%s1 + $0x218] sm:$0xff]
        %v422 = vld [vmem:[%s1 + $0x220] sm:$0xff]
        %v423 = vld [vmem:[%s1 + $0x228] sm:$0xff]
        %v424 = vld [vmem:[%s1 + $0x230] sm:$0xff]
        %v425 = vld [vmem:[%s1 + $0x238] sm:$0xff]
        %v426 = vld [vmem:[%s1 + $0x240] sm:$0xff]
        %v427 = vld [vmem:[%s1 + $0x248] sm:$0xff]
        %v428 = vld [vmem:[%s1 + $0x250] sm:$0xff]
        %v429 = vld [vmem:[%s1 + $0x258] sm:$0xff]
        %v430 = vld [vmem:[%s1 + $0x260] sm:$0xff]
        %v431 = vld [vmem:[%s1 + $0x268] sm:$0xff]
        %v432 = vld [vmem:[%s1 + $0x270] sm:$0xff]
        %v433 = vld [vmem:[%s1 + $0x278] sm:$0xff]
        %v434 = vld [vmem:[%s1 + $0x280] sm:$0xff]
        %v435 = vld [vmem:[%s1 + $0x288] sm:$0xff]
        %v436 = vld [vmem:[%s1 + $0x290] sm:$0xff]
        %v437 = vld [vmem:[%s1 + $0x298] sm:$0xff]
        %v438 = vld [vmem:[%s1 + $0x2a0] sm:$0xff]
        %v439 = vld [vmem:[%s1 + $0x2a8] sm:$0xff]
        %v440 = vld [vmem:[%s1 + $0x2b0] sm:$0xff]
        %v441 = vld [vmem:[%s1 + $0x2b8] sm:$0xff]
        %v442 = vld [vmem:[%s1 + $0x2c0] sm:$0xff]
        %v443 = vld [vmem:[%s1 + $0x2c8] sm:$0xff]
        %v444 = vld [vmem:[%s1 + $0x2d0] sm:$0xff]
        %v445 = vld [vmem:[%s1 + $0x2d8] sm:$0xff]
        %v446 = vld [vmem:[%s1 + $0x2e0] sm:$0xff]
        %v447 = vld [vmem:[%s1 + $0x2e8] sm:$0xff]
        %v448 = vld [vmem:[%s1 + $0x2f0] sm:$0xff]
        %v449 = vld [vmem:[%s1 + $0x2f8] sm:$0xff]
        %v450 = vld [vmem:[%s1 + $0x300] sm:$0xff]
        %v451 = vld [vmem:[%s1 + $0x308] sm:$0xff]
        %v452 = vld [vmem:[%s1 + $0x310] sm:$0xff]
        %v453 = vld [vmem:[%s1 + $0x318] sm:$0xff]
        %v454 = vld [vmem:[%s1 + $0x320] sm:$0xff]
        %v455 = vld [vmem:[%s1 + $0x328] sm:$0xff]
        %v456 = vld [vmem:[%s1 + $0x330] sm:$0xff]
        %v457 = vld [vmem:[%s1 + $0x338] sm:$0xff]
        %v458 = vld [vmem:[%s1 + $0x340] sm:$0xff]
        %v459 = vld [vmem:[%s1 + $0x348] sm:$0xff]
        %v460 = vld [vmem:[%s1 + $0x350] sm:$0xff]
        %v461 = vld [vmem:[%s1 + $0x358] sm:$0xff]
        %v462 = vld [vmem:[%s1 + $0x360] sm:$0xff]
        %v463 = vld [vmem:[%s1 + $0x368] sm:$0xff]
        %v464 = vld [vmem:[%s1 + $0x370] sm:$0xff]
        %v465 = vld [vmem:[%s1 + $0x378] sm:$0xff]
        %v466 = vld [vmem:[%s1 + $0x380] sm:$0xff]
        %v467 = vld [vmem:[%s1 + $0x388] sm:$0xff]
        %v468 = vld [vmem:[%s1 + $0x390] sm:$0xff]
        %v469 = vld [vmem:[%s1 + $0x398] sm:$0xff]
        %v470 = vld [vmem:[%s1 + $0x3a0] sm:$0xff]
        %v471 = vld [vmem:[%s1 + $0x3a8] sm:$0xff]
        %v472 = vld [vmem:[%s1 + $0x3b0] sm:$0xff]
        %v473 = vld [vmem:[%s1 + $0x3b8] sm:$0xff]
        %v474 = vld [vmem:[%s1 + $0x3c0] sm:$0xff]
        %v475 = vld [vmem:[%s1 + $0x3c8] sm:$0xff]
        %v476 = vld [vmem:[%s1 + $0x3d0] sm:$0xff]
        %v477 = vld [vmem:[%s1 + $0x3d8] sm:$0xff]
        %v478 = vld [vmem:[%s1 + $0x3e0] sm:$0xff]
        %v479 = vld [vmem:[%s1 + $0x3e8] sm:$0xff]
        %v480 = vld [vmem:[%s1 + $0x3f0] sm:$0xff]
        %v481 = vld [vmem:[%s1 + $0x3f8] sm:$0xff]
        %v482 = vld [vmem:[%s2] sm:$0xf]
        %v484 = vperm.slane %v482, 0
        %v485 = vperm.slane %v482, 1
        %v486 = vperm.slane %v482, 2
        %v487 = vperm.slane %v482, 3
        %v620 = vunpack.c.l.b16 %v354
        %v621 = vunpack.c.h.b16 %v354
        %v622 = vunpack.c.l.b16 %v355
        %v623 = vunpack.c.h.b16 %v355
        %v624 = vunpack.c.l.b16 %v356
        %v625 = vunpack.c.h.b16 %v356
        %v626 = vunpack.c.l.b16 %v357
        %v627 = vunpack.c.h.b16 %v357
        %v628 = vunpack.c.l.b16 %v358
        %v629 = vunpack.c.h.b16 %v358
        %v630 = vunpack.c.l.b16 %v359
        %v631 = vunpack.c.h.b16 %v359
        %v632 = vunpack.c.l.b16 %v360
        %v633 = vunpack.c.h.b16 %v360
        %v634 = vunpack.c.l.b16 %v361
        %v635 = vunpack.c.h.b16 %v361
        %v636 = vunpack.c.l.b16 %v362
        %v637 = vunpack.c.h.b16 %v362
        %v638 = vunpack.c.l.b16 %v363
        %v639 = vunpack.c.h.b16 %v363
        %v640 = vunpack.c.l.b16 %v364
        %v641 = vunpack.c.h.b16 %v364
        %v642 = vunpack.c.l.b16 %v365
        %v643 = vunpack.c.h.b16 %v365
        %v644 = vunpack.c.l.b16 %v366
        %v645 = vunpack.c.h.b16 %v366
        %v646 = vunpack.c.l.b16 %v367
        %v647 = vunpack.c.h.b16 %v367
        %v648 = vunpack.c.l.b16 %v368
        %v649 = vunpack.c.h.b16 %v368
        %v650 = vunpack.c.l.b16 %v369
        %v651 = vunpack.c.h.b16 %v369
        %v652 = vunpack.c.l.b16 %v370
        %v653 = vunpack.c.h.b16 %v370
        %v654 = vunpack.c.l.b16 %v371
        %v655 = vunpack.c.h.b16 %v371
        %v656 = vunpack.c.l.b16 %v372
        %v657 = vunpack.c.h.b16 %v372
        %v658 = vunpack.c.l.b16 %v373
        %v659 = vunpack.c.h.b16 %v373
        %v660 = vunpack.c.l.b16 %v374
        %v661 = vunpack.c.h.b16 %v374
        %v662 = vunpack.c.l.b16 %v375
        %v663 = vunpack.c.h.b16 %v375
        %v664 = vunpack.c.l.b16 %v376
        %v665 = vunpack.c.h.b16 %v376
        %v666 = vunpack.c.l.b16 %v377
        %v667 = vunpack.c.h.b16 %v377
        %v668 = vunpack.c.l.b16 %v378
        %v669 = vunpack.c.h.b16 %v378
        %v670 = vunpack.c.l.b16 %v379
        %v671 = vunpack.c.h.b16 %v379
        %v672 = vunpack.c.l.b16 %v380
        %v673 = vunpack.c.h.b16 %v380
        %v674 = vunpack.c.l.b16 %v381
        %v675 = vunpack.c.h.b16 %v381
        %v676 = vunpack.c.l.b16 %v382
        %v677 = vunpack.c.h.b16 %v382
        %v678 = vunpack.c.l.b16 %v383
        %v679 = vunpack.c.h.b16 %v383
        %v680 = vunpack.c.l.b16 %v384
        %v681 = vunpack.c.h.b16 %v384
        %v682 = vunpack.c.l.b16 %v385
        %v683 = vunpack.c.h.b16 %v385
        %v684 = vunpack.c.l.b16 %v386
        %v685 = vunpack.c.h.b16 %v386
        %v686 = vunpack.c.l.b16 %v387
        %v687 = vunpack.c.h.b16 %v387
        %v688 = vunpack.c.l.b16 %v388
        %v689 = vunpack.c.h.b16 %v388
        %v690 = vunpack.c.l.b16 %v389
        %v691 = vunpack.c.h.b16 %v389
        %v692 = vunpack.c.l.b16 %v390
        %v693 = vunpack.c.h.b16 %v390
        %v694 = vunpack.c.l.b16 %v391
        %v695 = vunpack.c.h.b16 %v391
        %v696 = vunpack.c.l.b16 %v392
        %v697 = vunpack.c.h.b16 %v392
        %v698 = vunpack.c.l.b16 %v393
        %v699 = vunpack.c.h.b16 %v393
        %v700 = vunpack.c.l.b16 %v394
        %v701 = vunpack.c.h.b16 %v394
        %v702 = vunpack.c.l.b16 %v395
        %v703 = vunpack.c.h.b16 %v395
        %v704 = vunpack.c.l.b16 %v396
        %v705 = vunpack.c.h.b16 %v396
        %v706 = vunpack.c.l.b16 %v397
        %v707 = vunpack.c.h.b16 %v397
        %v708 = vunpack.c.l.b16 %v398
        %v709 = vunpack.c.h.b16 %v398
        %v710 = vunpack.c.l.b16 %v399
        %v711 = vunpack.c.h.b16 %v399
        %v712 = vunpack.c.l.b16 %v400
        %v713 = vunpack.c.h.b16 %v400
        %v714 = vunpack.c.l.b16 %v401
        %v715 = vunpack.c.h.b16 %v401
        %v716 = vunpack.c.l.b16 %v402
        %v717 = vunpack.c.h.b16 %v402
        %v718 = vunpack.c.l.b16 %v403
        %v719 = vunpack.c.h.b16 %v403
        %v720 = vunpack.c.l.b16 %v404
        %v721 = vunpack.c.h.b16 %v404
        %v722 = vunpack.c.l.b16 %v405
        %v723 = vunpack.c.h.b16 %v405
        %v724 = vunpack.c.l.b16 %v406
        %v725 = vunpack.c.h.b16 %v406
        %v726 = vunpack.c.l.b16 %v407
        %v727 = vunpack.c.h.b16 %v407
        %v728 = vunpack.c.l.b16 %v408
        %v729 = vunpack.c.h.b16 %v408
        %v730 = vunpack.c.l.b16 %v409
        %v731 = vunpack.c.h.b16 %v409
        %v732 = vunpack.c.l.b16 %v410
        %v733 = vunpack.c.h.b16 %v410
        %v734 = vunpack.c.l.b16 %v411
        %v735 = vunpack.c.h.b16 %v411
        %v736 = vunpack.c.l.b16 %v412
        %v737 = vunpack.c.h.b16 %v412
        %v738 = vunpack.c.l.b16 %v413
        %v739 = vunpack.c.h.b16 %v413
        %v740 = vunpack.c.l.b16 %v414
        %v741 = vunpack.c.h.b16 %v414
        %v742 = vunpack.c.l.b16 %v415
        %v743 = vunpack.c.h.b16 %v415
        %v744 = vunpack.c.l.b16 %v416
        %v745 = vunpack.c.h.b16 %v416
        %v746 = vunpack.c.l.b16 %v417
        %v747 = vunpack.c.h.b16 %v417
        %v748 = vunpack.c.l.b16 %v418
        %v749 = vunpack.c.h.b16 %v418
        %v750 = vunpack.c.l.b16 %v419
        %v751 = vunpack.c.h.b16 %v419
        %v752 = vunpack.c.l.b16 %v420
        %v753 = vunpack.c.h.b16 %v420
        %v754 = vunpack.c.l.b16 %v421
        %v755 = vunpack.c.h.b16 %v421
        %v756 = vunpack.c.l.b16 %v422
        %v757 = vunpack.c.h.b16 %v422
        %v758 = vunpack.c.l.b16 %v423
        %v759 = vunpack.c.h.b16 %v423
        %v760 = vunpack.c.l.b16 %v424
        %v761 = vunpack.c.h.b16 %v424
        %v762 = vunpack.c.l.b16 %v425
        %v763 = vunpack.c.h.b16 %v425
        %v764 = vunpack.c.l.b16 %v426
        %v765 = vunpack.c.h.b16 %v426
        %v766 = vunpack.c.l.b16 %v427
        %v767 = vunpack.c.h.b16 %v427
        %v768 = vunpack.c.l.b16 %v428
        %v769 = vunpack.c.h.b16 %v428
        %v770 = vunpack.c.l.b16 %v429
        %v771 = vunpack.c.h.b16 %v429
        %v772 = vunpack.c.l.b16 %v430
        %v773 = vunpack.c.h.b16 %v430
        %v774 = vunpack.c.l.b16 %v431
        %v775 = vunpack.c.h.b16 %v431
        %v776 = vunpack.c.l.b16 %v432
        %v777 = vunpack.c.h.b16 %v432
        %v778 = vunpack.c.l.b16 %v433
        %v779 = vunpack.c.h.b16 %v433
        %v780 = vunpack.c.l.b16 %v434
        %v781 = vunpack.c.h.b16 %v434
        %v782 = vunpack.c.l.b16 %v435
        %v783 = vunpack.c.h.b16 %v435
        %v784 = vunpack.c.l.b16 %v436
        %v785 = vunpack.c.h.b16 %v436
        %v786 = vunpack.c.l.b16 %v437
        %v787 = vunpack.c.h.b16 %v437
        %v788 = vunpack.c.l.b16 %v438
        %v789 = vunpack.c.h.b16 %v438
        %v790 = vunpack.c.l.b16 %v439
        %v791 = vunpack.c.h.b16 %v439
        %v792 = vunpack.c.l.b16 %v440
        %v793 = vunpack.c.h.b16 %v440
        %v794 = vunpack.c.l.b16 %v441
        %v795 = vunpack.c.h.b16 %v441
        %v796 = vunpack.c.l.b16 %v442
        %v797 = vunpack.c.h.b16 %v442
        %v798 = vunpack.c.l.b16 %v443
        %v799 = vunpack.c.h.b16 %v443
        %v800 = vunpack.c.l.b16 %v444
        %v801 = vunpack.c.h.b16 %v444
        %v802 = vunpack.c.l.b16 %v445
        %v803 = vunpack.c.h.b16 %v445
        %v804 = vunpack.c.l.b16 %v446
        %v805 = vunpack.c.h.b16 %v446
        %v806 = vunpack.c.l.b16 %v447
        %v807 = vunpack.c.h.b16 %v447
        %v808 = vunpack.c.l.b16 %v448
        %v809 = vunpack.c.h.b16 %v448
        %v810 = vunpack.c.l.b16 %v449
        %v811 = vunpack.c.h.b16 %v449
        %v812 = vunpack.c.l.b16 %v450
        %v813 = vunpack.c.h.b16 %v450
        %v814 = vunpack.c.l.b16 %v451
        %v815 = vunpack.c.h.b16 %v451
        %v816 = vunpack.c.l.b16 %v452
        %v817 = vunpack.c.h.b16 %v452
        %v818 = vunpack.c.l.b16 %v453
        %v819 = vunpack.c.h.b16 %v453
        %v820 = vunpack.c.l.b16 %v454
        %v821 = vunpack.c.h.b16 %v454
        %v822 = vunpack.c.l.b16 %v455
        %v823 = vunpack.c.h.b16 %v455
        %v824 = vunpack.c.l.b16 %v456
        %v825 = vunpack.c.h.b16 %v456
        %v826 = vunpack.c.l.b16 %v457
        %v827 = vunpack.c.h.b16 %v457
        %v828 = vunpack.c.l.b16 %v458
        %v829 = vunpack.c.h.b16 %v458
        %v830 = vunpack.c.l.b16 %v459
        %v831 = vunpack.c.h.b16 %v459
        %v832 = vunpack.c.l.b16 %v460
        %v833 = vunpack.c.h.b16 %v460
        %v834 = vunpack.c.l.b16 %v461
        %v835 = vunpack.c.h.b16 %v461
        %v836 = vunpack.c.l.b16 %v462
        %v837 = vunpack.c.h.b16 %v462
        %v838 = vunpack.c.l.b16 %v463
        %v839 = vunpack.c.h.b16 %v463
        %v840 = vunpack.c.l.b16 %v464
        %v841 = vunpack.c.h.b16 %v464
        %v842 = vunpack.c.l.b16 %v465
        %v843 = vunpack.c.h.b16 %v465
        %v844 = vunpack.c.l.b16 %v466
        %v845 = vunpack.c.h.b16 %v466
        %v846 = vunpack.c.l.b16 %v467
        %v847 = vunpack.c.h.b16 %v467
        %v848 = vunpack.c.l.b16 %v468
        %v849 = vunpack.c.h.b16 %v468
        %v850 = vunpack.c.l.b16 %v469
        %v851 = vunpack.c.h.b16 %v469
        %v852 = vunpack.c.l.b16 %v470
        %v853 = vunpack.c.h.b16 %v470
        %v854 = vunpack.c.l.b16 %v471
        %v855 = vunpack.c.h.b16 %v471
        %v856 = vunpack.c.l.b16 %v472
        %v857 = vunpack.c.h.b16 %v472
        %v858 = vunpack.c.l.b16 %v473
        %v859 = vunpack.c.h.b16 %v473
        %v860 = vunpack.c.l.b16 %v474
        %v861 = vunpack.c.h.b16 %v474
        %v862 = vunpack.c.l.b16 %v475
        %v863 = vunpack.c.h.b16 %v475
        %v864 = vunpack.c.l.b16 %v476
        %v865 = vunpack.c.h.b16 %v476
        %v866 = vunpack.c.l.b16 %v477
        %v867 = vunpack.c.h.b16 %v477
        %v868 = vunpack.c.l.b16 %v478
        %v869 = vunpack.c.h.b16 %v478
        %v870 = vunpack.c.l.b16 %v479
        %v871 = vunpack.c.h.b16 %v479
        %v872 = vunpack.c.l.b16 %v480
        %v873 = vunpack.c.h.b16 %v480
        %v874 = vunpack.c.l.b16 %v481
        %v875 = vunpack.c.h.b16 %v481
        %v876 = vpack.c.b16 %v624, %v620
        %v877 = vpack.c.b16 %v625, %v621
        %v878 = vpack.c.b16 %v626, %v622
        %v879 = vpack.c.b16 %v627, %v623
        %v880 = vpack.c.b16 %v632, %v628
        %v881 = vpack.c.b16 %v633, %v629
        %v882 = vpack.c.b16 %v634, %v630
        %v883 = vpack.c.b16 %v635, %v631
        %v884 = vpack.c.b16 %v640, %v636
        %v885 = vpack.c.b16 %v641, %v637
        %v886 = vpack.c.b16 %v642, %v638
        %v887 = vpack.c.b16 %v643, %v639
        %v888 = vpack.c.b16 %v648, %v644
        %v889 = vpack.c.b16 %v649, %v645
        %v890 = vpack.c.b16 %v650, %v646
        %v891 = vpack.c.b16 %v651, %v647
        %v892 = vpack.c.b16 %v656, %v652
        %v893 = vpack.c.b16 %v657, %v653
        %v894 = vpack.c.b16 %v658, %v654
        %v895 = vpack.c.b16 %v659, %v655
        %v896 = vpack.c.b16 %v664, %v660
        %v897 = vpack.c.b16 %v665, %v661
        %v898 = vpack.c.b16 %v666, %v662
        %v899 = vpack.c.b16 %v667, %v663
        %v900 = vpack.c.b16 %v672, %v668
        %v901 = vpack.c.b16 %v673, %v669
        %v902 = vpack.c.b16 %v674, %v670
        %v903 = vpack.c.b16 %v675, %v671
        %v904 = vpack.c.b16 %v680, %v676
        %v905 = vpack.c.b16 %v681, %v677
        %v906 = vpack.c.b16 %v682, %v678
        %v907 = vpack.c.b16 %v683, %v679
        %v908 = vpack.c.b16 %v688, %v684
        %v909 = vpack.c.b16 %v689, %v685
        %v910 = vpack.c.b16 %v690, %v686
        %v911 = vpack.c.b16 %v691, %v687
        %v912 = vpack.c.b16 %v696, %v692
        %v913 = vpack.c.b16 %v697, %v693
        %v914 = vpack.c.b16 %v698, %v694
        %v915 = vpack.c.b16 %v699, %v695
        %v916 = vpack.c.b16 %v704, %v700
        %v917 = vpack.c.b16 %v705, %v701
        %v918 = vpack.c.b16 %v706, %v702
        %v919 = vpack.c.b16 %v707, %v703
        %v920 = vpack.c.b16 %v712, %v708
        %v921 = vpack.c.b16 %v713, %v709
        %v922 = vpack.c.b16 %v714, %v710
        %v923 = vpack.c.b16 %v715, %v711
        %v924 = vpack.c.b16 %v720, %v716
        %v925 = vpack.c.b16 %v721, %v717
        %v926 = vpack.c.b16 %v722, %v718
        %v927 = vpack.c.b16 %v723, %v719
        %v928 = vpack.c.b16 %v728, %v724
        %v929 = vpack.c.b16 %v729, %v725
        %v930 = vpack.c.b16 %v730, %v726
        %v931 = vpack.c.b16 %v731, %v727
        %v932 = vpack.c.b16 %v736, %v732
        %v933 = vpack.c.b16 %v737, %v733
        %v934 = vpack.c.b16 %v738, %v734
        %v935 = vpack.c.b16 %v739, %v735
        %v936 = vpack.c.b16 %v744, %v740
        %v937 = vpack.c.b16 %v745, %v741
        %v938 = vpack.c.b16 %v746, %v742
        %v939 = vpack.c.b16 %v747, %v743
        %v940 = vpack.c.b16 %v752, %v748
        %v941 = vpack.c.b16 %v753, %v749
        %v942 = vpack.c.b16 %v754, %v750
        %v943 = vpack.c.b16 %v755, %v751
        %v944 = vpack.c.b16 %v760, %v756
        %v945 = vpack.c.b16 %v761, %v757
        %v946 = vpack.c.b16 %v762, %v758
        %v947 = vpack.c.b16 %v763, %v759
        %v948 = vpack.c.b16 %v768, %v764
        %v949 = vpack.c.b16 %v769, %v765
        %v950 = vpack.c.b16 %v770, %v766
        %v951 = vpack.c.b16 %v771, %v767
        %v952 = vpack.c.b16 %v776, %v772
        %v953 = vpack.c.b16 %v777, %v773
        %v954 = vpack.c.b16 %v778, %v774
        %v955 = vpack.c.b16 %v779, %v775
        %v956 = vpack.c.b16 %v784, %v780
        %v957 = vpack.c.b16 %v785, %v781
        %v958 = vpack.c.b16 %v786, %v782
        %v959 = vpack.c.b16 %v787, %v783
        %v960 = vpack.c.b16 %v792, %v788
        %v961 = vpack.c.b16 %v793, %v789
        %v962 = vpack.c.b16 %v794, %v790
        %v963 = vpack.c.b16 %v795, %v791
        %v964 = vpack.c.b16 %v800, %v796
        %v965 = vpack.c.b16 %v801, %v797
        %v966 = vpack.c.b16 %v802, %v798
        %v967 = vpack.c.b16 %v803, %v799
        %v968 = vpack.c.b16 %v808, %v804
        %v969 = vpack.c.b16 %v809, %v805
        %v970 = vpack.c.b16 %v810, %v806
        %v971 = vpack.c.b16 %v811, %v807
        %v972 = vpack.c.b16 %v816, %v812
        %v973 = vpack.c.b16 %v817, %v813
        %v974 = vpack.c.b16 %v818, %v814
        %v975 = vpack.c.b16 %v819, %v815
        %v976 = vpack.c.b16 %v824, %v820
        %v977 = vpack.c.b16 %v825, %v821
        %v978 = vpack.c.b16 %v826, %v822
        %v979 = vpack.c.b16 %v827, %v823
        %v980 = vpack.c.b16 %v832, %v828
        %v981 = vpack.c.b16 %v833, %v829
        %v982 = vpack.c.b16 %v834, %v830
        %v983 = vpack.c.b16 %v835, %v831
        %v984 = vpack.c.b16 %v840, %v836
        %v985 = vpack.c.b16 %v841, %v837
        %v986 = vpack.c.b16 %v842, %v838
        %v987 = vpack.c.b16 %v843, %v839
        %v988 = vpack.c.b16 %v848, %v844
        %v989 = vpack.c.b16 %v849, %v845
        %v990 = vpack.c.b16 %v850, %v846
        %v991 = vpack.c.b16 %v851, %v847
        %v992 = vpack.c.b16 %v856, %v852
        %v993 = vpack.c.b16 %v857, %v853
        %v994 = vpack.c.b16 %v858, %v854
        %v995 = vpack.c.b16 %v859, %v855
        %v996 = vpack.c.b16 %v864, %v860
        %v997 = vpack.c.b16 %v865, %v861
        %v998 = vpack.c.b16 %v866, %v862
        %v999 = vpack.c.b16 %v867, %v863
        %v1000 = vpack.c.b16 %v872, %v868
        %v1001 = vpack.c.b16 %v873, %v869
        %v1002 = vpack.c.b16 %v874, %v870
        %v1003 = vpack.c.b16 %v875, %v871
        %1132 = vmatpush.bf16.msra.mxu0 %v904
        %1133 = vmatpush.bf16.msra.mxu0 %v900
        %1134 = vmatpush.bf16.msra.mxu0 %v896
        %1135 = vmatpush.bf16.msra.mxu0 %v892
        %1136 = vmatpush.bf16.msra.mxu0 %v888
        %1137 = vmatpush.bf16.msra.mxu0 %v884
        %1138 = vmatpush.bf16.msra.mxu0 %v880
        %1139 = vmatpush.bf16.msra.mxu0 %v876
        %1140 = vmatmul.bf16.gmra.mxu0 %v322
        %v1141 = vpop.f32.mrf.mxu0
        %v1142 = vadd.f32 %v484, %v1141
        %v1143 = vpop.f32.mrf.mxu0
        %v1144 = vadd.f32 %v484, %v1143
        %1145 = vmatmul.bf16.gmra.mxu0 %v326
        %v1146 = vpop.f32.mrf.mxu0
        %v1147 = vadd.f32 %v484, %v1146
        %v1148 = vpop.f32.mrf.mxu0
        %v1149 = vadd.f32 %v484, %v1148
        %1150 = vmatmul.bf16.gmra.mxu0 %v330
        %v1151 = vpop.f32.mrf.mxu0
        %v1152 = vadd.f32 %v484, %v1151
        %v1153 = vpop.f32.mrf.mxu0
        %v1154 = vadd.f32 %v484, %v1153
        %1155 = vmatmul.bf16.gmra.mxu0 %v334
        %v1156 = vpop.f32.mrf.mxu0
        %v1157 = vadd.f32 %v484, %v1156
        %v1158 = vpop.f32.mrf.mxu0
        %v1159 = vadd.f32 %v484, %v1158
        %1160 = vmatmul.bf16.gmra.mxu0 %v338
        %v1161 = vpop.f32.mrf.mxu0
        %v1162 = vadd.f32 %v484, %v1161
        %v1163 = vpop.f32.mrf.mxu0
        %v1164 = vadd.f32 %v484, %v1163
        %1165 = vmatmul.bf16.gmra.mxu0 %v342
        %v1166 = vpop.f32.mrf.mxu0
        %v1167 = vadd.f32 %v484, %v1166
        %v1168 = vpop.f32.mrf.mxu0
        %v1169 = vadd.f32 %v484, %v1168
        %1170 = vmatmul.bf16.gmra.mxu0 %v346
        %v1171 = vpop.f32.mrf.mxu0
        %v1172 = vadd.f32 %v484, %v1171
        %v1173 = vpop.f32.mrf.mxu0
        %v1174 = vadd.f32 %v484, %v1173
        %1175 = vmatmul.bf16.gmra.mxu0 %v350
        %v1176 = vpop.f32.mrf.mxu0
        %v1177 = vadd.f32 %v484, %v1176
        %v1178 = vpop.f32.mrf.mxu0
        %v1179 = vadd.f32 %v484, %v1178
        %1180 = vdwg.mxu0
        %1181 = vmatpush.bf16.msra.mxu0 %v936
        %1182 = vmatpush.bf16.msra.mxu0 %v932
        %1183 = vmatpush.bf16.msra.mxu0 %v928
        %1184 = vmatpush.bf16.msra.mxu0 %v924
        %1185 = vmatpush.bf16.msra.mxu0 %v920
        %1186 = vmatpush.bf16.msra.mxu0 %v916
        %1187 = vmatpush.bf16.msra.mxu0 %v912
        %1188 = vmatpush.bf16.msra.mxu0 %v908
        %1189 = vmatmul.bf16.gmra.mxu0 %v323
        %v1190 = vpop.f32.mrf.mxu0
        %v1191 = vadd.f32 %v1142, %v1190
        %v1192 = vpop.f32.mrf.mxu0
        %v1193 = vadd.f32 %v1144, %v1192
        %1194 = vmatmul.bf16.gmra.mxu0 %v327
        %v1195 = vpop.f32.mrf.mxu0
        %v1196 = vadd.f32 %v1147, %v1195
        %v1197 = vpop.f32.mrf.mxu0
        %v1198 = vadd.f32 %v1149, %v1197
        %1199 = vmatmul.bf16.gmra.mxu0 %v331
        %v1200 = vpop.f32.mrf.mxu0
        %v1201 = vadd.f32 %v1152, %v1200
        %v1202 = vpop.f32.mrf.mxu0
        %v1203 = vadd.f32 %v1154, %v1202
        %1204 = vmatmul.bf16.gmra.mxu0 %v335
        %v1205 = vpop.f32.mrf.mxu0
        %v1206 = vadd.f32 %v1157, %v1205
        %v1207 = vpop.f32.mrf.mxu0
        %v1208 = vadd.f32 %v1159, %v1207
        %1209 = vmatmul.bf16.gmra.mxu0 %v339
        %v1210 = vpop.f32.mrf.mxu0
        %v1211 = vadd.f32 %v1162, %v1210
        %v1212 = vpop.f32.mrf.mxu0
        %v1213 = vadd.f32 %v1164, %v1212
        %1214 = vmatmul.bf16.gmra.mxu0 %v343
        %v1215 = vpop.f32.mrf.mxu0
        %v1216 = vadd.f32 %v1167, %v1215
        %v1217 = vpop.f32.mrf.mxu0
        %v1218 = vadd.f32 %v1169, %v1217
        %1219 = vmatmul.bf16.gmra.mxu0 %v347
        %v1220 = vpop.f32.mrf.mxu0
        %v1221 = vadd.f32 %v1172, %v1220
        %v1222 = vpop.f32.mrf.mxu0
        %v1223 = vadd.f32 %v1174, %v1222
        %1224 = vmatmul.bf16.gmra.mxu0 %v351
        %v1225 = vpop.f32.mrf.mxu0
        %v1226 = vadd.f32 %v1177, %v1225
        %v1227 = vpop.f32.mrf.mxu0
        %v1228 = vadd.f32 %v1179, %v1227
        %1229 = vdwg.mxu0
        %1230 = vmatpush.bf16.msra.mxu0 %v968
        %1231 = vmatpush.bf16.msra.mxu0 %v964
        %1232 = vmatpush.bf16.msra.mxu0 %v960
        %1233 = vmatpush.bf16.msra.mxu0 %v956
        %1234 = vmatpush.bf16.msra.mxu0 %v952
        %1235 = vmatpush.bf16.msra.mxu0 %v948
        %1236 = vmatpush.bf16.msra.mxu0 %v944
        %1237 = vmatpush.bf16.msra.mxu0 %v940
        %1238 = vmatmul.bf16.gmra.mxu0 %v324
        %v1239 = vpop.f32.mrf.mxu0
        %v1240 = vadd.f32 %v1191, %v1239
        %v1241 = vpop.f32.mrf.mxu0
        %v1242 = vadd.f32 %v1193, %v1241
        %1243 = vmatmul.bf16.gmra.mxu0 %v328
        %v1244 = vpop.f32.mrf.mxu0
        %v1245 = vadd.f32 %v1196, %v1244
        %v1246 = vpop.f32.mrf.mxu0
        %v1247 = vadd.f32 %v1198, %v1246
        %1248 = vmatmul.bf16.gmra.mxu0 %v332
        %v1249 = vpop.f32.mrf.mxu0
        %v1250 = vadd.f32 %v1201, %v1249
        %v1251 = vpop.f32.mrf.mxu0
        %v1252 = vadd.f32 %v1203, %v1251
        %1253 = vmatmul.bf16.gmra.mxu0 %v336
        %v1254 = vpop.f32.mrf.mxu0
        %v1255 = vadd.f32 %v1206, %v1254
        %v1256 = vpop.f32.mrf.mxu0
        %v1257 = vadd.f32 %v1208, %v1256
        %1258 = vmatmul.bf16.gmra.mxu0 %v340
        %v1259 = vpop.f32.mrf.mxu0
        %v1260 = vadd.f32 %v1211, %v1259
        %v1261 = vpop.f32.mrf.mxu0
        %v1262 = vadd.f32 %v1213, %v1261
        %1263 = vmatmul.bf16.gmra.mxu0 %v344
        %v1264 = vpop.f32.mrf.mxu0
        %v1265 = vadd.f32 %v1216, %v1264
        %v1266 = vpop.f32.mrf.mxu0
        %v1267 = vadd.f32 %v1218, %v1266
        %1268 = vmatmul.bf16.gmra.mxu0 %v348
        %v1269 = vpop.f32.mrf.mxu0
        %v1270 = vadd.f32 %v1221, %v1269
        %v1271 = vpop.f32.mrf.mxu0
        %v1272 = vadd.f32 %v1223, %v1271
        %1273 = vmatmul.bf16.gmra.mxu0 %v352
        %v1274 = vpop.f32.mrf.mxu0
        %v1275 = vadd.f32 %v1226, %v1274
        %v1276 = vpop.f32.mrf.mxu0
        %v1277 = vadd.f32 %v1228, %v1276
        %1278 = vdwg.mxu0
        %1279 = vmatpush.bf16.msra.mxu0 %v1000
        %1280 = vmatpush.bf16.msra.mxu0 %v996
        %1281 = vmatpush.bf16.msra.mxu0 %v992
        %1282 = vmatpush.bf16.msra.mxu0 %v988
        %1283 = vmatpush.bf16.msra.mxu0 %v984
        %1284 = vmatpush.bf16.msra.mxu0 %v980
        %1285 = vmatpush.bf16.msra.mxu0 %v976
        %1286 = vmatpush.bf16.msra.mxu0 %v972
        %1287 = vmatmul.bf16.gmra.mxu0 %v325
        %v1288 = vpop.f32.mrf.mxu0
        %v1289 = vadd.f32 %v1240, %v1288
        %v1290 = vpop.f32.mrf.mxu0
        %v1291 = vadd.f32 %v1242, %v1290
        %1292 = vmatmul.bf16.gmra.mxu0 %v329
        %v1293 = vpop.f32.mrf.mxu0
        %v1294 = vadd.f32 %v1245, %v1293
        %v1295 = vpop.f32.mrf.mxu0
        %v1296 = vadd.f32 %v1247, %v1295
        %1297 = vmatmul.bf16.gmra.mxu0 %v333
        %v1298 = vpop.f32.mrf.mxu0
        %v1299 = vadd.f32 %v1250, %v1298
        %v1300 = vpop.f32.mrf.mxu0
        %v1301 = vadd.f32 %v1252, %v1300
        %1302 = vmatmul.bf16.gmra.mxu0 %v337
        %v1303 = vpop.f32.mrf.mxu0
        %v1304 = vadd.f32 %v1255, %v1303
        %v1305 = vpop.f32.mrf.mxu0
        %v1306 = vadd.f32 %v1257, %v1305
        %1307 = vmatmul.bf16.gmra.mxu0 %v341
        %v1308 = vpop.f32.mrf.mxu0
        %v1309 = vadd.f32 %v1260, %v1308
        %v1310 = vpop.f32.mrf.mxu0
        %v1311 = vadd.f32 %v1262, %v1310
        %1312 = vmatmul.bf16.gmra.mxu0 %v345
        %v1313 = vpop.f32.mrf.mxu0
        %v1314 = vadd.f32 %v1265, %v1313
        %v1315 = vpop.f32.mrf.mxu0
        %v1316 = vadd.f32 %v1267, %v1315
        %1317 = vmatmul.bf16.gmra.mxu0 %v349
        %v1318 = vpop.f32.mrf.mxu0
        %v1319 = vadd.f32 %v1270, %v1318
        %v1320 = vpop.f32.mrf.mxu0
        %v1321 = vadd.f32 %v1272, %v1320
        %1322 = vmatmul.bf16.gmra.mxu0 %v353
        %v1323 = vpop.f32.mrf.mxu0
        %v1324 = vadd.f32 %v1275, %v1323
        %v1325 = vpop.f32.mrf.mxu0
        %v1326 = vadd.f32 %v1277, %v1325
        %1327 = vdwg.mxu0
        %1328 = vmatpush.bf16.msra.mxu0 %v905
        %1329 = vmatpush.bf16.msra.mxu0 %v901
        %1330 = vmatpush.bf16.msra.mxu0 %v897
        %1331 = vmatpush.bf16.msra.mxu0 %v893
        %1332 = vmatpush.bf16.msra.mxu0 %v889
        %1333 = vmatpush.bf16.msra.mxu0 %v885
        %1334 = vmatpush.bf16.msra.mxu0 %v881
        %1335 = vmatpush.bf16.msra.mxu0 %v877
        %1336 = vmatmul.bf16.gmra.mxu0 %v322
        %v1337 = vpop.f32.mrf.mxu0
        %v1338 = vadd.f32 %v485, %v1337
        %v1339 = vpop.f32.mrf.mxu0
        %v1340 = vadd.f32 %v485, %v1339
        %1341 = vmatmul.bf16.gmra.mxu0 %v326
        %v1342 = vpop.f32.mrf.mxu0
        %v1343 = vadd.f32 %v485, %v1342
        %v1344 = vpop.f32.mrf.mxu0
        %v1345 = vadd.f32 %v485, %v1344
        %1346 = vmatmul.bf16.gmra.mxu0 %v330
        %v1347 = vpop.f32.mrf.mxu0
        %v1348 = vadd.f32 %v485, %v1347
        %v1349 = vpop.f32.mrf.mxu0
        %v1350 = vadd.f32 %v485, %v1349
        %1351 = vmatmul.bf16.gmra.mxu0 %v334
        %v1352 = vpop.f32.mrf.mxu0
        %v1353 = vadd.f32 %v485, %v1352
        %v1354 = vpop.f32.mrf.mxu0
        %v1355 = vadd.f32 %v485, %v1354
        %1356 = vmatmul.bf16.gmra.mxu0 %v338
        %v1357 = vpop.f32.mrf.mxu0
        %v1358 = vadd.f32 %v485, %v1357
        %v1359 = vpop.f32.mrf.mxu0
        %v1360 = vadd.f32 %v485, %v1359
        %1361 = vmatmul.bf16.gmra.mxu0 %v342
        %v1362 = vpop.f32.mrf.mxu0
        %v1363 = vadd.f32 %v485, %v1362
        %v1364 = vpop.f32.mrf.mxu0
        %v1365 = vadd.f32 %v485, %v1364
        %1366 = vmatmul.bf16.gmra.mxu0 %v346
        %v1367 = vpop.f32.mrf.mxu0
        %v1368 = vadd.f32 %v485, %v1367
        %v1369 = vpop.f32.mrf.mxu0
        %v1370 = vadd.f32 %v485, %v1369
        %1371 = vmatmul.bf16.gmra.mxu0 %v350
        %v1372 = vpop.f32.mrf.mxu0
        %v1373 = vadd.f32 %v485, %v1372
        %v1374 = vpop.f32.mrf.mxu0
        %v1375 = vadd.f32 %v485, %v1374
        %1376 = vdwg.mxu0
        %1377 = vmatpush.bf16.msra.mxu0 %v937
        %1378 = vmatpush.bf16.msra.mxu0 %v933
        %1379 = vmatpush.bf16.msra.mxu0 %v929
        %1380 = vmatpush.bf16.msra.mxu0 %v925
        %1381 = vmatpush.bf16.msra.mxu0 %v921
        %1382 = vmatpush.bf16.msra.mxu0 %v917
        %1383 = vmatpush.bf16.msra.mxu0 %v913
        %1384 = vmatpush.bf16.msra.mxu0 %v909
        %1385 = vmatmul.bf16.gmra.mxu0 %v323
        %v1386 = vpop.f32.mrf.mxu0
        %v1387 = vadd.f32 %v1338, %v1386
        %v1388 = vpop.f32.mrf.mxu0
        %v1389 = vadd.f32 %v1340, %v1388
        %1390 = vmatmul.bf16.gmra.mxu0 %v327
        %v1391 = vpop.f32.mrf.mxu0
        %v1392 = vadd.f32 %v1343, %v1391
        %v1393 = vpop.f32.mrf.mxu0
        %v1394 = vadd.f32 %v1345, %v1393
        %1395 = vmatmul.bf16.gmra.mxu0 %v331
        %v1396 = vpop.f32.mrf.mxu0
        %v1397 = vadd.f32 %v1348, %v1396
        %v1398 = vpop.f32.mrf.mxu0
        %v1399 = vadd.f32 %v1350, %v1398
        %1400 = vmatmul.bf16.gmra.mxu0 %v335
        %v1401 = vpop.f32.mrf.mxu0
        %v1402 = vadd.f32 %v1353, %v1401
        %v1403 = vpop.f32.mrf.mxu0
        %v1404 = vadd.f32 %v1355, %v1403
        %1405 = vmatmul.bf16.gmra.mxu0 %v339
        %v1406 = vpop.f32.mrf.mxu0
        %v1407 = vadd.f32 %v1358, %v1406
        %v1408 = vpop.f32.mrf.mxu0
        %v1409 = vadd.f32 %v1360, %v1408
        %1410 = vmatmul.bf16.gmra.mxu0 %v343
        %v1411 = vpop.f32.mrf.mxu0
        %v1412 = vadd.f32 %v1363, %v1411
        %v1413 = vpop.f32.mrf.mxu0
        %v1414 = vadd.f32 %v1365, %v1413
        %1415 = vmatmul.bf16.gmra.mxu0 %v347
        %v1416 = vpop.f32.mrf.mxu0
        %v1417 = vadd.f32 %v1368, %v1416
        %v1418 = vpop.f32.mrf.mxu0
        %v1419 = vadd.f32 %v1370, %v1418
        %1420 = vmatmul.bf16.gmra.mxu0 %v351
        %v1421 = vpop.f32.mrf.mxu0
        %v1422 = vadd.f32 %v1373, %v1421
        %v1423 = vpop.f32.mrf.mxu0
        %v1424 = vadd.f32 %v1375, %v1423
        %1425 = vdwg.mxu0
        %1426 = vmatpush.bf16.msra.mxu0 %v969
        %1427 = vmatpush.bf16.msra.mxu0 %v965
        %1428 = vmatpush.bf16.msra.mxu0 %v961
        %1429 = vmatpush.bf16.msra.mxu0 %v957
        %1430 = vmatpush.bf16.msra.mxu0 %v953
        %1431 = vmatpush.bf16.msra.mxu0 %v949
        %1432 = vmatpush.bf16.msra.mxu0 %v945
        %1433 = vmatpush.bf16.msra.mxu0 %v941
        %1434 = vmatmul.bf16.gmra.mxu0 %v324
        %v1435 = vpop.f32.mrf.mxu0
        %v1436 = vadd.f32 %v1387, %v1435
        %v1437 = vpop.f32.mrf.mxu0
        %v1438 = vadd.f32 %v1389, %v1437
        %1439 = vmatmul.bf16.gmra.mxu0 %v328
        %v1440 = vpop.f32.mrf.mxu0
        %v1441 = vadd.f32 %v1392, %v1440
        %v1442 = vpop.f32.mrf.mxu0
        %v1443 = vadd.f32 %v1394, %v1442
        %1444 = vmatmul.bf16.gmra.mxu0 %v332
        %v1445 = vpop.f32.mrf.mxu0
        %v1446 = vadd.f32 %v1397, %v1445
        %v1447 = vpop.f32.mrf.mxu0
        %v1448 = vadd.f32 %v1399, %v1447
        %1449 = vmatmul.bf16.gmra.mxu0 %v336
        %v1450 = vpop.f32.mrf.mxu0
        %v1451 = vadd.f32 %v1402, %v1450
        %v1452 = vpop.f32.mrf.mxu0
        %v1453 = vadd.f32 %v1404, %v1452
        %1454 = vmatmul.bf16.gmra.mxu0 %v340
        %v1455 = vpop.f32.mrf.mxu0
        %v1456 = vadd.f32 %v1407, %v1455
        %v1457 = vpop.f32.mrf.mxu0
        %v1458 = vadd.f32 %v1409, %v1457
        %1459 = vmatmul.bf16.gmra.mxu0 %v344
        %v1460 = vpop.f32.mrf.mxu0
        %v1461 = vadd.f32 %v1412, %v1460
        %v1462 = vpop.f32.mrf.mxu0
        %v1463 = vadd.f32 %v1414, %v1462
        %1464 = vmatmul.bf16.gmra.mxu0 %v348
        %v1465 = vpop.f32.mrf.mxu0
        %v1466 = vadd.f32 %v1417, %v1465
        %v1467 = vpop.f32.mrf.mxu0
        %v1468 = vadd.f32 %v1419, %v1467
        %1469 = vmatmul.bf16.gmra.mxu0 %v352
        %v1470 = vpop.f32.mrf.mxu0
        %v1471 = vadd.f32 %v1422, %v1470
        %v1472 = vpop.f32.mrf.mxu0
        %v1473 = vadd.f32 %v1424, %v1472
        %1474 = vdwg.mxu0
        %1475 = vmatpush.bf16.msra.mxu0 %v1001
        %1476 = vmatpush.bf16.msra.mxu0 %v997
        %1477 = vmatpush.bf16.msra.mxu0 %v993
        %1478 = vmatpush.bf16.msra.mxu0 %v989
        %1479 = vmatpush.bf16.msra.mxu0 %v985
        %1480 = vmatpush.bf16.msra.mxu0 %v981
        %1481 = vmatpush.bf16.msra.mxu0 %v977
        %1482 = vmatpush.bf16.msra.mxu0 %v973
        %1483 = vmatmul.bf16.gmra.mxu0 %v325
        %v1484 = vpop.f32.mrf.mxu0
        %v1485 = vadd.f32 %v1436, %v1484
        %v1486 = vpop.f32.mrf.mxu0
        %v1487 = vadd.f32 %v1438, %v1486
        %1488 = vmatmul.bf16.gmra.mxu0 %v329
        %v1489 = vpop.f32.mrf.mxu0
        %v1490 = vadd.f32 %v1441, %v1489
        %v1491 = vpop.f32.mrf.mxu0
        %v1492 = vadd.f32 %v1443, %v1491
        %1493 = vmatmul.bf16.gmra.mxu0 %v333
        %v1494 = vpop.f32.mrf.mxu0
        %v1495 = vadd.f32 %v1446, %v1494
        %v1496 = vpop.f32.mrf.mxu0
        %v1497 = vadd.f32 %v1448, %v1496
        %1498 = vmatmul.bf16.gmra.mxu0 %v337
        %v1499 = vpop.f32.mrf.mxu0
        %v1500 = vadd.f32 %v1451, %v1499
        %v1501 = vpop.f32.mrf.mxu0
        %v1502 = vadd.f32 %v1453, %v1501
        %1503 = vmatmul.bf16.gmra.mxu0 %v341
        %v1504 = vpop.f32.mrf.mxu0
        %v1505 = vadd.f32 %v1456, %v1504
        %v1506 = vpop.f32.mrf.mxu0
        %v1507 = vadd.f32 %v1458, %v1506
        %1508 = vmatmul.bf16.gmra.mxu0 %v345
        %v1509 = vpop.f32.mrf.mxu0
        %v1510 = vadd.f32 %v1461, %v1509
        %v1511 = vpop.f32.mrf.mxu0
        %v1512 = vadd.f32 %v1463, %v1511
        %1513 = vmatmul.bf16.gmra.mxu0 %v349
        %v1514 = vpop.f32.mrf.mxu0
        %v1515 = vadd.f32 %v1466, %v1514
        %v1516 = vpop.f32.mrf.mxu0
        %v1517 = vadd.f32 %v1468, %v1516
        %1518 = vmatmul.bf16.gmra.mxu0 %v353
        %v1519 = vpop.f32.mrf.mxu0
        %v1520 = vadd.f32 %v1471, %v1519
        %v1521 = vpop.f32.mrf.mxu0
        %v1522 = vadd.f32 %v1473, %v1521
        %1523 = vdwg.mxu0
        %1524 = vmatpush.bf16.msra.mxu0 %v906
        %1525 = vmatpush.bf16.msra.mxu0 %v902
        %1526 = vmatpush.bf16.msra.mxu0 %v898
        %1527 = vmatpush.bf16.msra.mxu0 %v894
        %1528 = vmatpush.bf16.msra.mxu0 %v890
        %1529 = vmatpush.bf16.msra.mxu0 %v886
        %1530 = vmatpush.bf16.msra.mxu0 %v882
        %1531 = vmatpush.bf16.msra.mxu0 %v878
        %1532 = vmatmul.bf16.gmra.mxu0 %v322
        %v1533 = vpop.f32.mrf.mxu0
        %v1534 = vadd.f32 %v486, %v1533
        %v1535 = vpop.f32.mrf.mxu0
        %v1536 = vadd.f32 %v486, %v1535
        %1537 = vmatmul.bf16.gmra.mxu0 %v326
        %v1538 = vpop.f32.mrf.mxu0
        %v1539 = vadd.f32 %v486, %v1538
        %v1540 = vpop.f32.mrf.mxu0
        %v1541 = vadd.f32 %v486, %v1540
        %1542 = vmatmul.bf16.gmra.mxu0 %v330
        %v1543 = vpop.f32.mrf.mxu0
        %v1544 = vadd.f32 %v486, %v1543
        %v1545 = vpop.f32.mrf.mxu0
        %v1546 = vadd.f32 %v486, %v1545
        %1547 = vmatmul.bf16.gmra.mxu0 %v334
        %v1548 = vpop.f32.mrf.mxu0
        %v1549 = vadd.f32 %v486, %v1548
        %v1550 = vpop.f32.mrf.mxu0
        %v1551 = vadd.f32 %v486, %v1550
        %1552 = vmatmul.bf16.gmra.mxu0 %v338
        %v1553 = vpop.f32.mrf.mxu0
        %v1554 = vadd.f32 %v486, %v1553
        %v1555 = vpop.f32.mrf.mxu0
        %v1556 = vadd.f32 %v486, %v1555
        %1557 = vmatmul.bf16.gmra.mxu0 %v342
        %v1558 = vpop.f32.mrf.mxu0
        %v1559 = vadd.f32 %v486, %v1558
        %v1560 = vpop.f32.mrf.mxu0
        %v1561 = vadd.f32 %v486, %v1560
        %1562 = vmatmul.bf16.gmra.mxu0 %v346
        %v1563 = vpop.f32.mrf.mxu0
        %v1564 = vadd.f32 %v486, %v1563
        %v1565 = vpop.f32.mrf.mxu0
        %v1566 = vadd.f32 %v486, %v1565
        %1567 = vmatmul.bf16.gmra.mxu0 %v350
        %v1568 = vpop.f32.mrf.mxu0
        %v1569 = vadd.f32 %v486, %v1568
        %v1570 = vpop.f32.mrf.mxu0
        %v1571 = vadd.f32 %v486, %v1570
        %1572 = vdwg.mxu0
        %1573 = vmatpush.bf16.msra.mxu0 %v938
        %1574 = vmatpush.bf16.msra.mxu0 %v934
        %1575 = vmatpush.bf16.msra.mxu0 %v930
        %1576 = vmatpush.bf16.msra.mxu0 %v926
        %1577 = vmatpush.bf16.msra.mxu0 %v922
        %1578 = vmatpush.bf16.msra.mxu0 %v918
        %1579 = vmatpush.bf16.msra.mxu0 %v914
        %1580 = vmatpush.bf16.msra.mxu0 %v910
        %1581 = vmatmul.bf16.gmra.mxu0 %v323
        %v1582 = vpop.f32.mrf.mxu0
        %v1583 = vadd.f32 %v1534, %v1582
        %v1584 = vpop.f32.mrf.mxu0
        %v1585 = vadd.f32 %v1536, %v1584
        %1586 = vmatmul.bf16.gmra.mxu0 %v327
        %v1587 = vpop.f32.mrf.mxu0
        %v1588 = vadd.f32 %v1539, %v1587
        %v1589 = vpop.f32.mrf.mxu0
        %v1590 = vadd.f32 %v1541, %v1589
        %1591 = vmatmul.bf16.gmra.mxu0 %v331
        %v1592 = vpop.f32.mrf.mxu0
        %v1593 = vadd.f32 %v1544, %v1592
        %v1594 = vpop.f32.mrf.mxu0
        %v1595 = vadd.f32 %v1546, %v1594
        %1596 = vmatmul.bf16.gmra.mxu0 %v335
        %v1597 = vpop.f32.mrf.mxu0
        %v1598 = vadd.f32 %v1549, %v1597
        %v1599 = vpop.f32.mrf.mxu0
        %v1600 = vadd.f32 %v1551, %v1599
        %1601 = vmatmul.bf16.gmra.mxu0 %v339
        %v1602 = vpop.f32.mrf.mxu0
        %v1603 = vadd.f32 %v1554, %v1602
        %v1604 = vpop.f32.mrf.mxu0
        %v1605 = vadd.f32 %v1556, %v1604
        %1606 = vmatmul.bf16.gmra.mxu0 %v343
        %v1607 = vpop.f32.mrf.mxu0
        %v1608 = vadd.f32 %v1559, %v1607
        %v1609 = vpop.f32.mrf.mxu0
        %v1610 = vadd.f32 %v1561, %v1609
        %1611 = vmatmul.bf16.gmra.mxu0 %v347
        %v1612 = vpop.f32.mrf.mxu0
        %v1613 = vadd.f32 %v1564, %v1612
        %v1614 = vpop.f32.mrf.mxu0
        %v1615 = vadd.f32 %v1566, %v1614
        %1616 = vmatmul.bf16.gmra.mxu0 %v351
        %v1617 = vpop.f32.mrf.mxu0
        %v1618 = vadd.f32 %v1569, %v1617
        %v1619 = vpop.f32.mrf.mxu0
        %v1620 = vadd.f32 %v1571, %v1619
        %1621 = vdwg.mxu0
        %1622 = vmatpush.bf16.msra.mxu0 %v970
        %1623 = vmatpush.bf16.msra.mxu0 %v966
        %1624 = vmatpush.bf16.msra.mxu0 %v962
        %1625 = vmatpush.bf16.msra.mxu0 %v958
        %1626 = vmatpush.bf16.msra.mxu0 %v954
        %1627 = vmatpush.bf16.msra.mxu0 %v950
        %1628 = vmatpush.bf16.msra.mxu0 %v946
        %1629 = vmatpush.bf16.msra.mxu0 %v942
        %1630 = vmatmul.bf16.gmra.mxu0 %v324
        %v1631 = vpop.f32.mrf.mxu0
        %v1632 = vadd.f32 %v1583, %v1631
        %v1633 = vpop.f32.mrf.mxu0
        %v1634 = vadd.f32 %v1585, %v1633
        %1635 = vmatmul.bf16.gmra.mxu0 %v328
        %v1636 = vpop.f32.mrf.mxu0
        %v1637 = vadd.f32 %v1588, %v1636
        %v1638 = vpop.f32.mrf.mxu0
        %v1639 = vadd.f32 %v1590, %v1638
        %1640 = vmatmul.bf16.gmra.mxu0 %v332
        %v1641 = vpop.f32.mrf.mxu0
        %v1642 = vadd.f32 %v1593, %v1641
        %v1643 = vpop.f32.mrf.mxu0
        %v1644 = vadd.f32 %v1595, %v1643
        %1645 = vmatmul.bf16.gmra.mxu0 %v336
        %v1646 = vpop.f32.mrf.mxu0
        %v1647 = vadd.f32 %v1598, %v1646
        %v1648 = vpop.f32.mrf.mxu0
        %v1649 = vadd.f32 %v1600, %v1648
        %1650 = vmatmul.bf16.gmra.mxu0 %v340
        %v1651 = vpop.f32.mrf.mxu0
        %v1652 = vadd.f32 %v1603, %v1651
        %v1653 = vpop.f32.mrf.mxu0
        %v1654 = vadd.f32 %v1605, %v1653
        %1655 = vmatmul.bf16.gmra.mxu0 %v344
        %v1656 = vpop.f32.mrf.mxu0
        %v1657 = vadd.f32 %v1608, %v1656
        %v1658 = vpop.f32.mrf.mxu0
        %v1659 = vadd.f32 %v1610, %v1658
        %1660 = vmatmul.bf16.gmra.mxu0 %v348
        %v1661 = vpop.f32.mrf.mxu0
        %v1662 = vadd.f32 %v1613, %v1661
        %v1663 = vpop.f32.mrf.mxu0
        %v1664 = vadd.f32 %v1615, %v1663
        %1665 = vmatmul.bf16.gmra.mxu0 %v352
        %v1666 = vpop.f32.mrf.mxu0
        %v1667 = vadd.f32 %v1618, %v1666
        %v1668 = vpop.f32.mrf.mxu0
        %v1669 = vadd.f32 %v1620, %v1668
        %1670 = vdwg.mxu0
        %1671 = vmatpush.bf16.msra.mxu0 %v1002
        %1672 = vmatpush.bf16.msra.mxu0 %v998
        %1673 = vmatpush.bf16.msra.mxu0 %v994
        %1674 = vmatpush.bf16.msra.mxu0 %v990
        %1675 = vmatpush.bf16.msra.mxu0 %v986
        %1676 = vmatpush.bf16.msra.mxu0 %v982
        %1677 = vmatpush.bf16.msra.mxu0 %v978
        %1678 = vmatpush.bf16.msra.mxu0 %v974
        %1679 = vmatmul.bf16.gmra.mxu0 %v325
        %v1680 = vpop.f32.mrf.mxu0
        %v1681 = vadd.f32 %v1632, %v1680
        %v1682 = vpop.f32.mrf.mxu0
        %v1683 = vadd.f32 %v1634, %v1682
        %1684 = vmatmul.bf16.gmra.mxu0 %v329
        %v1685 = vpop.f32.mrf.mxu0
        %v1686 = vadd.f32 %v1637, %v1685
        %v1687 = vpop.f32.mrf.mxu0
        %v1688 = vadd.f32 %v1639, %v1687
        %1689 = vmatmul.bf16.gmra.mxu0 %v333
        %v1690 = vpop.f32.mrf.mxu0
        %v1691 = vadd.f32 %v1642, %v1690
        %v1692 = vpop.f32.mrf.mxu0
        %v1693 = vadd.f32 %v1644, %v1692
        %1694 = vmatmul.bf16.gmra.mxu0 %v337
        %v1695 = vpop.f32.mrf.mxu0
        %v1696 = vadd.f32 %v1647, %v1695
        %v1697 = vpop.f32.mrf.mxu0
        %v1698 = vadd.f32 %v1649, %v1697
        %1699 = vmatmul.bf16.gmra.mxu0 %v341
        %v1700 = vpop.f32.mrf.mxu0
        %v1701 = vadd.f32 %v1652, %v1700
        %v1702 = vpop.f32.mrf.mxu0
        %v1703 = vadd.f32 %v1654, %v1702
        %1704 = vmatmul.bf16.gmra.mxu0 %v345
        %v1705 = vpop.f32.mrf.mxu0
        %v1706 = vadd.f32 %v1657, %v1705
        %v1707 = vpop.f32.mrf.mxu0
        %v1708 = vadd.f32 %v1659, %v1707
        %1709 = vmatmul.bf16.gmra.mxu0 %v349
        %v1710 = vpop.f32.mrf.mxu0
        %v1711 = vadd.f32 %v1662, %v1710
        %v1712 = vpop.f32.mrf.mxu0
        %v1713 = vadd.f32 %v1664, %v1712
        %1714 = vmatmul.bf16.gmra.mxu0 %v353
        %v1715 = vpop.f32.mrf.mxu0
        %v1716 = vadd.f32 %v1667, %v1715
        %v1717 = vpop.f32.mrf.mxu0
        %v1718 = vadd.f32 %v1669, %v1717
        %1719 = vdwg.mxu0
        %1720 = vmatpush.bf16.msra.mxu0 %v907
        %1721 = vmatpush.bf16.msra.mxu0 %v903
        %1722 = vmatpush.bf16.msra.mxu0 %v899
        %1723 = vmatpush.bf16.msra.mxu0 %v895
        %1724 = vmatpush.bf16.msra.mxu0 %v891
        %1725 = vmatpush.bf16.msra.mxu0 %v887
        %1726 = vmatpush.bf16.msra.mxu0 %v883
        %1727 = vmatpush.bf16.msra.mxu0 %v879
        %1728 = vmatmul.bf16.gmra.mxu0 %v322
        %v1729 = vpop.f32.mrf.mxu0
        %v1730 = vadd.f32 %v487, %v1729
        %v1731 = vpop.f32.mrf.mxu0
        %v1732 = vadd.f32 %v487, %v1731
        %1733 = vmatmul.bf16.gmra.mxu0 %v326
        %v1734 = vpop.f32.mrf.mxu0
        %v1735 = vadd.f32 %v487, %v1734
        %v1736 = vpop.f32.mrf.mxu0
        %v1737 = vadd.f32 %v487, %v1736
        %1738 = vmatmul.bf16.gmra.mxu0 %v330
        %v1739 = vpop.f32.mrf.mxu0
        %v1740 = vadd.f32 %v487, %v1739
        %v1741 = vpop.f32.mrf.mxu0
        %v1742 = vadd.f32 %v487, %v1741
        %1743 = vmatmul.bf16.gmra.mxu0 %v334
        %v1744 = vpop.f32.mrf.mxu0
        %v1745 = vadd.f32 %v487, %v1744
        %v1746 = vpop.f32.mrf.mxu0
        %v1747 = vadd.f32 %v487, %v1746
        %1748 = vmatmul.bf16.gmra.mxu0 %v338
        %v1749 = vpop.f32.mrf.mxu0
        %v1750 = vadd.f32 %v487, %v1749
        %v1751 = vpop.f32.mrf.mxu0
        %v1752 = vadd.f32 %v487, %v1751
        %1753 = vmatmul.bf16.gmra.mxu0 %v342
        %v1754 = vpop.f32.mrf.mxu0
        %v1755 = vadd.f32 %v487, %v1754
        %v1756 = vpop.f32.mrf.mxu0
        %v1757 = vadd.f32 %v487, %v1756
        %1758 = vmatmul.bf16.gmra.mxu0 %v346
        %v1759 = vpop.f32.mrf.mxu0
        %v1760 = vadd.f32 %v487, %v1759
        %v1761 = vpop.f32.mrf.mxu0
        %v1762 = vadd.f32 %v487, %v1761
        %1763 = vmatmul.bf16.gmra.mxu0 %v350
        %v1764 = vpop.f32.mrf.mxu0
        %v1765 = vadd.f32 %v487, %v1764
        %v1766 = vpop.f32.mrf.mxu0
        %v1767 = vadd.f32 %v487, %v1766
        %1768 = vdwg.mxu0
        %1769 = vmatpush.bf16.msra.mxu0 %v939
        %1770 = vmatpush.bf16.msra.mxu0 %v935
        %1771 = vmatpush.bf16.msra.mxu0 %v931
        %1772 = vmatpush.bf16.msra.mxu0 %v927
        %1773 = vmatpush.bf16.msra.mxu0 %v923
        %1774 = vmatpush.bf16.msra.mxu0 %v919
        %1775 = vmatpush.bf16.msra.mxu0 %v915
        %1776 = vmatpush.bf16.msra.mxu0 %v911
        %1777 = vmatmul.bf16.gmra.mxu0 %v323
        %v1778 = vpop.f32.mrf.mxu0
        %v1779 = vadd.f32 %v1730, %v1778
        %v1780 = vpop.f32.mrf.mxu0
        %v1781 = vadd.f32 %v1732, %v1780
        %1782 = vmatmul.bf16.gmra.mxu0 %v327
        %v1783 = vpop.f32.mrf.mxu0
        %v1784 = vadd.f32 %v1735, %v1783
        %v1785 = vpop.f32.mrf.mxu0
        %v1786 = vadd.f32 %v1737, %v1785
        %1787 = vmatmul.bf16.gmra.mxu0 %v331
        %v1788 = vpop.f32.mrf.mxu0
        %v1789 = vadd.f32 %v1740, %v1788
        %v1790 = vpop.f32.mrf.mxu0
        %v1791 = vadd.f32 %v1742, %v1790
        %1792 = vmatmul.bf16.gmra.mxu0 %v335
        %v1793 = vpop.f32.mrf.mxu0
        %v1794 = vadd.f32 %v1745, %v1793
        %v1795 = vpop.f32.mrf.mxu0
        %v1796 = vadd.f32 %v1747, %v1795
        %1797 = vmatmul.bf16.gmra.mxu0 %v339
        %v1798 = vpop.f32.mrf.mxu0
        %v1799 = vadd.f32 %v1750, %v1798
        %v1800 = vpop.f32.mrf.mxu0
        %v1801 = vadd.f32 %v1752, %v1800
        %1802 = vmatmul.bf16.gmra.mxu0 %v343
        %v1803 = vpop.f32.mrf.mxu0
        %v1804 = vadd.f32 %v1755, %v1803
        %v1805 = vpop.f32.mrf.mxu0
        %v1806 = vadd.f32 %v1757, %v1805
        %1807 = vmatmul.bf16.gmra.mxu0 %v347
        %v1808 = vpop.f32.mrf.mxu0
        %v1809 = vadd.f32 %v1760, %v1808
        %v1810 = vpop.f32.mrf.mxu0
        %v1811 = vadd.f32 %v1762, %v1810
        %1812 = vmatmul.bf16.gmra.mxu0 %v351
        %v1813 = vpop.f32.mrf.mxu0
        %v1814 = vadd.f32 %v1765, %v1813
        %v1815 = vpop.f32.mrf.mxu0
        %v1816 = vadd.f32 %v1767, %v1815
        %1817 = vdwg.mxu0
        %1818 = vmatpush.bf16.msra.mxu0 %v971
        %1819 = vmatpush.bf16.msra.mxu0 %v967
        %1820 = vmatpush.bf16.msra.mxu0 %v963
        %1821 = vmatpush.bf16.msra.mxu0 %v959
        %1822 = vmatpush.bf16.msra.mxu0 %v955
        %1823 = vmatpush.bf16.msra.mxu0 %v951
        %1824 = vmatpush.bf16.msra.mxu0 %v947
        %1825 = vmatpush.bf16.msra.mxu0 %v943
        %1826 = vmatmul.bf16.gmra.mxu0 %v324
        %v1827 = vpop.f32.mrf.mxu0
        %v1828 = vadd.f32 %v1779, %v1827
        %v1829 = vpop.f32.mrf.mxu0
        %v1830 = vadd.f32 %v1781, %v1829
        %1831 = vmatmul.bf16.gmra.mxu0 %v328
        %v1832 = vpop.f32.mrf.mxu0
        %v1833 = vadd.f32 %v1784, %v1832
        %v1834 = vpop.f32.mrf.mxu0
        %v1835 = vadd.f32 %v1786, %v1834
        %1836 = vmatmul.bf16.gmra.mxu0 %v332
        %v1837 = vpop.f32.mrf.mxu0
        %v1838 = vadd.f32 %v1789, %v1837
        %v1839 = vpop.f32.mrf.mxu0
        %v1840 = vadd.f32 %v1791, %v1839
        %1841 = vmatmul.bf16.gmra.mxu0 %v336
        %v1842 = vpop.f32.mrf.mxu0
        %v1843 = vadd.f32 %v1794, %v1842
        %v1844 = vpop.f32.mrf.mxu0
        %v1845 = vadd.f32 %v1796, %v1844
        %1846 = vmatmul.bf16.gmra.mxu0 %v340
        %v1847 = vpop.f32.mrf.mxu0
        %v1848 = vadd.f32 %v1799, %v1847
        %v1849 = vpop.f32.mrf.mxu0
        %v1850 = vadd.f32 %v1801, %v1849
        %1851 = vmatmul.bf16.gmra.mxu0 %v344
        %v1852 = vpop.f32.mrf.mxu0
        %v1853 = vadd.f32 %v1804, %v1852
        %v1854 = vpop.f32.mrf.mxu0
        %v1855 = vadd.f32 %v1806, %v1854
        %1856 = vmatmul.bf16.gmra.mxu0 %v348
        %v1857 = vpop.f32.mrf.mxu0
        %v1858 = vadd.f32 %v1809, %v1857
        %v1859 = vpop.f32.mrf.mxu0
        %v1860 = vadd.f32 %v1811, %v1859
        %1861 = vmatmul.bf16.gmra.mxu0 %v352
        %v1862 = vpop.f32.mrf.mxu0
        %v1863 = vadd.f32 %v1814, %v1862
        %v1864 = vpop.f32.mrf.mxu0
        %v1865 = vadd.f32 %v1816, %v1864
        %1866 = vdwg.mxu0
        %1867 = vmatpush.bf16.msra.mxu0 %v1003
        %1868 = vmatpush.bf16.msra.mxu0 %v999
        %1869 = vmatpush.bf16.msra.mxu0 %v995
        %1870 = vmatpush.bf16.msra.mxu0 %v991
        %1871 = vmatpush.bf16.msra.mxu0 %v987
        %1872 = vmatpush.bf16.msra.mxu0 %v983
        %1873 = vmatpush.bf16.msra.mxu0 %v979
        %1874 = vmatpush.bf16.msra.mxu0 %v975
        %1875 = vmatmul.bf16.gmra.mxu0 %v325
        %v1876 = vpop.f32.mrf.mxu0
        %v1877 = vadd.f32 %v1828, %v1876
        %v1878 = vpop.f32.mrf.mxu0
        %v1879 = vadd.f32 %v1830, %v1878
        %1880 = vmatmul.bf16.gmra.mxu0 %v329
        %v1881 = vpop.f32.mrf.mxu0
        %v1882 = vadd.f32 %v1833, %v1881
        %v1883 = vpop.f32.mrf.mxu0
        %v1884 = vadd.f32 %v1835, %v1883
        %1885 = vmatmul.bf16.gmra.mxu0 %v333
        %v1886 = vpop.f32.mrf.mxu0
        %v1887 = vadd.f32 %v1838, %v1886
        %v1888 = vpop.f32.mrf.mxu0
        %v1889 = vadd.f32 %v1840, %v1888
        %1890 = vmatmul.bf16.gmra.mxu0 %v337
        %v1891 = vpop.f32.mrf.mxu0
        %v1892 = vadd.f32 %v1843, %v1891
        %v1893 = vpop.f32.mrf.mxu0
        %v1894 = vadd.f32 %v1845, %v1893
        %1895 = vmatmul.bf16.gmra.mxu0 %v341
        %v1896 = vpop.f32.mrf.mxu0
        %v1897 = vadd.f32 %v1848, %v1896
        %v1898 = vpop.f32.mrf.mxu0
        %v1899 = vadd.f32 %v1850, %v1898
        %1900 = vmatmul.bf16.gmra.mxu0 %v345
        %v1901 = vpop.f32.mrf.mxu0
        %v1902 = vadd.f32 %v1853, %v1901
        %v1903 = vpop.f32.mrf.mxu0
        %v1904 = vadd.f32 %v1855, %v1903
        %1905 = vmatmul.bf16.gmra.mxu0 %v349
        %v1906 = vpop.f32.mrf.mxu0
        %v1907 = vadd.f32 %v1858, %v1906
        %v1908 = vpop.f32.mrf.mxu0
        %v1909 = vadd.f32 %v1860, %v1908
        %1910 = vmatmul.bf16.gmra.mxu0 %v353
        %v1911 = vpop.f32.mrf.mxu0
        %v1912 = vadd.f32 %v1863, %v1911
        %v1913 = vpop.f32.mrf.mxu0
        %v1914 = vadd.f32 %v1865, %v1913
        %1915 = vdwg.mxu0
        %v1916 = vmax.f32 %v1289, 0.0
        %v1917 = vmax.f32 %v1485, 0.0
        %v1918 = vmax.f32 %v1681, 0.0
        %v1919 = vmax.f32 %v1877, 0.0
        %v1920 = vmax.f32 %v1291, 0.0
        %v1921 = vmax.f32 %v1487, 0.0
        %v1922 = vmax.f32 %v1683, 0.0
        %v1923 = vmax.f32 %v1879, 0.0
        %v1924 = vmax.f32 %v1294, 0.0
        %v1925 = vmax.f32 %v1490, 0.0
        %v1926 = vmax.f32 %v1686, 0.0
        %v1927 = vmax.f32 %v1882, 0.0
        %v1928 = vmax.f32 %v1296, 0.0
        %v1929 = vmax.f32 %v1492, 0.0
        %v1930 = vmax.f32 %v1688, 0.0
        %v1931 = vmax.f32 %v1884, 0.0
        %v1932 = vmax.f32 %v1299, 0.0
        %v1933 = vmax.f32 %v1495, 0.0
        %v1934 = vmax.f32 %v1691, 0.0
        %v1935 = vmax.f32 %v1887, 0.0
        %v1936 = vmax.f32 %v1301, 0.0
        %v1937 = vmax.f32 %v1497, 0.0
        %v1938 = vmax.f32 %v1693, 0.0
        %v1939 = vmax.f32 %v1889, 0.0
        %v1940 = vmax.f32 %v1304, 0.0
        %v1941 = vmax.f32 %v1500, 0.0
        %v1942 = vmax.f32 %v1696, 0.0
        %v1943 = vmax.f32 %v1892, 0.0
        %v1944 = vmax.f32 %v1306, 0.0
        %v1945 = vmax.f32 %v1502, 0.0
        %v1946 = vmax.f32 %v1698, 0.0
        %v1947 = vmax.f32 %v1894, 0.0
        %v1948 = vmax.f32 %v1309, 0.0
        %v1949 = vmax.f32 %v1505, 0.0
        %v1950 = vmax.f32 %v1701, 0.0
        %v1951 = vmax.f32 %v1897, 0.0
        %v1952 = vmax.f32 %v1311, 0.0
        %v1953 = vmax.f32 %v1507, 0.0
        %v1954 = vmax.f32 %v1703, 0.0
        %v1955 = vmax.f32 %v1899, 0.0
        %v1956 = vmax.f32 %v1314, 0.0
        %v1957 = vmax.f32 %v1510, 0.0
        %v1958 = vmax.f32 %v1706, 0.0
        %v1959 = vmax.f32 %v1902, 0.0
        %v1960 = vmax.f32 %v1316, 0.0
        %v1961 = vmax.f32 %v1512, 0.0
        %v1962 = vmax.f32 %v1708, 0.0
        %v1963 = vmax.f32 %v1904, 0.0
        %v1964 = vmax.f32 %v1319, 0.0
        %v1965 = vmax.f32 %v1515, 0.0
        %v1966 = vmax.f32 %v1711, 0.0
        %v1967 = vmax.f32 %v1907, 0.0
        %v1968 = vmax.f32 %v1321, 0.0
        %v1969 = vmax.f32 %v1517, 0.0
        %v1970 = vmax.f32 %v1713, 0.0
        %v1971 = vmax.f32 %v1909, 0.0
        %v1972 = vmax.f32 %v1324, 0.0
        %v1973 = vmax.f32 %v1520, 0.0
        %v1974 = vmax.f32 %v1716, 0.0
        %v1975 = vmax.f32 %v1912, 0.0
        %v1976 = vmax.f32 %v1326, 0.0
        %v1977 = vmax.f32 %v1522, 0.0
        %v1978 = vmax.f32 %v1718, 0.0
        %v1979 = vmax.f32 %v1914, 0.0
        %v1980 = vpack.c.bf16 %v1920, %v1916
        %v1981 = vpack.c.bf16 %v1921, %v1917
        %v1982 = vpack.c.bf16 %v1922, %v1918
        %v1983 = vpack.c.bf16 %v1923, %v1919
        %v1984 = vpack.c.bf16 %v1928, %v1924
        %v1985 = vpack.c.bf16 %v1929, %v1925
        %v1986 = vpack.c.bf16 %v1930, %v1926
        %v1987 = vpack.c.bf16 %v1931, %v1927
        %v1988 = vpack.c.bf16 %v1936, %v1932
        %v1989 = vpack.c.bf16 %v1937, %v1933
        %v1990 = vpack.c.bf16 %v1938, %v1934
        %v1991 = vpack.c.bf16 %v1939, %v1935
        %v1992 = vpack.c.bf16 %v1944, %v1940
        %v1993 = vpack.c.bf16 %v1945, %v1941
        %v1994 = vpack.c.bf16 %v1946, %v1942
        %v1995 = vpack.c.bf16 %v1947, %v1943
        %v1996 = vpack.c.bf16 %v1952, %v1948
        %v1997 = vpack.c.bf16 %v1953, %v1949
        %v1998 = vpack.c.bf16 %v1954, %v1950
        %v1999 = vpack.c.bf16 %v1955, %v1951
        %v2000 = vpack.c.bf16 %v1960, %v1956
        %v2001 = vpack.c.bf16 %v1961, %v1957
        %v2002 = vpack.c.bf16 %v1962, %v1958
        %v2003 = vpack.c.bf16 %v1963, %v1959
        %v2004 = vpack.c.bf16 %v1968, %v1964
        %v2005 = vpack.c.bf16 %v1969, %v1965
        %v2006 = vpack.c.bf16 %v1970, %v1966
        %v2007 = vpack.c.bf16 %v1971, %v1967
        %v2008 = vpack.c.bf16 %v1976, %v1972
        %v2009 = vpack.c.bf16 %v1977, %v1973
        %v2010 = vpack.c.bf16 %v1978, %v1974
        %v2011 = vpack.c.bf16 %v1979, %v1975
        %v2012 = vld [vmem:[%s3] sm:$0xf]
        %v2013 = vld [vmem:[%s3 + $0x4] sm:$0xf]
        %v2014 = vld [vmem:[%s3 + $0x8] sm:$0xf]
        %v2015 = vld [vmem:[%s3 + $0xc] sm:$0xf]
        %v2016 = vld [vmem:[%s3 + $0x10] sm:$0xf]
        %v2017 = vld [vmem:[%s3 + $0x14] sm:$0xf]
        %v2018 = vld [vmem:[%s3 + $0x18] sm:$0xf]
        %v2019 = vld [vmem:[%s3 + $0x1c] sm:$0xf]
        %v2020 = vld [vmem:[%s3 + $0x20] sm:$0xf]
        %v2021 = vld [vmem:[%s3 + $0x24] sm:$0xf]
        %v2022 = vld [vmem:[%s3 + $0x28] sm:$0xf]
        %v2023 = vld [vmem:[%s3 + $0x2c] sm:$0xf]
        %v2024 = vld [vmem:[%s3 + $0x30] sm:$0xf]
        %v2025 = vld [vmem:[%s3 + $0x34] sm:$0xf]
        %v2026 = vld [vmem:[%s3 + $0x38] sm:$0xf]
        %v2027 = vld [vmem:[%s3 + $0x3c] sm:$0xf]
        %v2028 = vld [vmem:[%s3 + $0x40] sm:$0xf]
        %v2029 = vld [vmem:[%s3 + $0x44] sm:$0xf]
        %v2030 = vld [vmem:[%s3 + $0x48] sm:$0xf]
        %v2031 = vld [vmem:[%s3 + $0x4c] sm:$0xf]
        %v2032 = vld [vmem:[%s3 + $0x50] sm:$0xf]
        %v2033 = vld [vmem:[%s3 + $0x54] sm:$0xf]
        %v2034 = vld [vmem:[%s3 + $0x58] sm:$0xf]
        %v2035 = vld [vmem:[%s3 + $0x5c] sm:$0xf]
        %v2036 = vld [vmem:[%s3 + $0x60] sm:$0xf]
        %v2037 = vld [vmem:[%s3 + $0x64] sm:$0xf]
        %v2038 = vld [vmem:[%s3 + $0x68] sm:$0xf]
        %v2039 = vld [vmem:[%s3 + $0x6c] sm:$0xf]
        %v2040 = vld [vmem:[%s3 + $0x70] sm:$0xf]
        %v2041 = vld [vmem:[%s3 + $0x74] sm:$0xf]
        %v2042 = vld [vmem:[%s3 + $0x78] sm:$0xf]
        %v2043 = vld [vmem:[%s3 + $0x7c] sm:$0xf]
        %v2044 = vld [vmem:[%s3 + $0x80] sm:$0xf]
        %v2045 = vld [vmem:[%s3 + $0x84] sm:$0xf]
        %v2046 = vld [vmem:[%s3 + $0x88] sm:$0xf]
        %v2047 = vld [vmem:[%s3 + $0x8c] sm:$0xf]
        %v2048 = vld [vmem:[%s3 + $0x90] sm:$0xf]
        %v2049 = vld [vmem:[%s3 + $0x94] sm:$0xf]
        %v2050 = vld [vmem:[%s3 + $0x98] sm:$0xf]
        %v2051 = vld [vmem:[%s3 + $0x9c] sm:$0xf]
        %v2052 = vld [vmem:[%s3 + $0xa0] sm:$0xf]
        %v2053 = vld [vmem:[%s3 + $0xa4] sm:$0xf]
        %v2054 = vld [vmem:[%s3 + $0xa8] sm:$0xf]
        %v2055 = vld [vmem:[%s3 + $0xac] sm:$0xf]
        %v2056 = vld [vmem:[%s3 + $0xb0] sm:$0xf]
        %v2057 = vld [vmem:[%s3 + $0xb4] sm:$0xf]
        %v2058 = vld [vmem:[%s3 + $0xb8] sm:$0xf]
        %v2059 = vld [vmem:[%s3 + $0xbc] sm:$0xf]
        %v2060 = vld [vmem:[%s3 + $0xc0] sm:$0xf]
        %v2061 = vld [vmem:[%s3 + $0xc4] sm:$0xf]
        %v2062 = vld [vmem:[%s3 + $0xc8] sm:$0xf]
        %v2063 = vld [vmem:[%s3 + $0xcc] sm:$0xf]
        %v2064 = vld [vmem:[%s3 + $0xd0] sm:$0xf]
        %v2065 = vld [vmem:[%s3 + $0xd4] sm:$0xf]
        %v2066 = vld [vmem:[%s3 + $0xd8] sm:$0xf]
        %v2067 = vld [vmem:[%s3 + $0xdc] sm:$0xf]
        %v2068 = vld [vmem:[%s3 + $0xe0] sm:$0xf]
        %v2069 = vld [vmem:[%s3 + $0xe4] sm:$0xf]
        %v2070 = vld [vmem:[%s3 + $0xe8] sm:$0xf]
        %v2071 = vld [vmem:[%s3 + $0xec] sm:$0xf]
        %v2072 = vld [vmem:[%s3 + $0xf0] sm:$0xf]
        %v2073 = vld [vmem:[%s3 + $0xf4] sm:$0xf]
        %v2074 = vld [vmem:[%s3 + $0xf8] sm:$0xf]
        %v2075 = vld [vmem:[%s3 + $0xfc] sm:$0xf]
        %v2076 = vld [vmem:[%s4] sm:$0x1]
        %v2078 = vperm.slane %v2076, 0
        %v2144 = vunpack.c.l.b16 %v2012
        %v2145 = vunpack.c.l.b16 %v2013
        %v2146 = vunpack.c.l.b16 %v2014
        %v2147 = vunpack.c.l.b16 %v2015
        %v2148 = vunpack.c.l.b16 %v2016
        %v2149 = vunpack.c.l.b16 %v2017
        %v2150 = vunpack.c.l.b16 %v2018
        %v2151 = vunpack.c.l.b16 %v2019
        %v2152 = vunpack.c.l.b16 %v2020
        %v2153 = vunpack.c.l.b16 %v2021
        %v2154 = vunpack.c.l.b16 %v2022
        %v2155 = vunpack.c.l.b16 %v2023
        %v2156 = vunpack.c.l.b16 %v2024
        %v2157 = vunpack.c.l.b16 %v2025
        %v2158 = vunpack.c.l.b16 %v2026
        %v2159 = vunpack.c.l.b16 %v2027
        %v2160 = vunpack.c.l.b16 %v2028
        %v2161 = vunpack.c.l.b16 %v2029
        %v2162 = vunpack.c.l.b16 %v2030
        %v2163 = vunpack.c.l.b16 %v2031
        %v2164 = vunpack.c.l.b16 %v2032
        %v2165 = vunpack.c.l.b16 %v2033
        %v2166 = vunpack.c.l.b16 %v2034
        %v2167 = vunpack.c.l.b16 %v2035
        %v2168 = vunpack.c.l.b16 %v2036
        %v2169 = vunpack.c.l.b16 %v2037
        %v2170 = vunpack.c.l.b16 %v2038
        %v2171 = vunpack.c.l.b16 %v2039
        %v2172 = vunpack.c.l.b16 %v2040
        %v2173 = vunpack.c.l.b16 %v2041
        %v2174 = vunpack.c.l.b16 %v2042
        %v2175 = vunpack.c.l.b16 %v2043
        %v2176 = vunpack.c.l.b16 %v2044
        %v2177 = vunpack.c.l.b16 %v2045
        %v2178 = vunpack.c.l.b16 %v2046
        %v2179 = vunpack.c.l.b16 %v2047
        %v2180 = vunpack.c.l.b16 %v2048
        %v2181 = vunpack.c.l.b16 %v2049
        %v2182 = vunpack.c.l.b16 %v2050
        %v2183 = vunpack.c.l.b16 %v2051
        %v2184 = vunpack.c.l.b16 %v2052
        %v2185 = vunpack.c.l.b16 %v2053
        %v2186 = vunpack.c.l.b16 %v2054
        %v2187 = vunpack.c.l.b16 %v2055
        %v2188 = vunpack.c.l.b16 %v2056
        %v2189 = vunpack.c.l.b16 %v2057
        %v2190 = vunpack.c.l.b16 %v2058
        %v2191 = vunpack.c.l.b16 %v2059
        %v2192 = vunpack.c.l.b16 %v2060
        %v2193 = vunpack.c.l.b16 %v2061
        %v2194 = vunpack.c.l.b16 %v2062
        %v2195 = vunpack.c.l.b16 %v2063
        %v2196 = vunpack.c.l.b16 %v2064
        %v2197 = vunpack.c.l.b16 %v2065
        %v2198 = vunpack.c.l.b16 %v2066
        %v2199 = vunpack.c.l.b16 %v2067
        %v2200 = vunpack.c.l.b16 %v2068
        %v2201 = vunpack.c.l.b16 %v2069
        %v2202 = vunpack.c.l.b16 %v2070
        %v2203 = vunpack.c.l.b16 %v2071
        %v2204 = vunpack.c.l.b16 %v2072
        %v2205 = vunpack.c.l.b16 %v2073
        %v2206 = vunpack.c.l.b16 %v2074
        %v2207 = vunpack.c.l.b16 %v2075
        %v2208 = vpack.c.b16 %v2145, %v2144
        %v2209 = vpack.c.b16 %v2147, %v2146
        %v2210 = vpack.c.b16 %v2149, %v2148
        %v2211 = vpack.c.b16 %v2151, %v2150
        %v2212 = vpack.c.b16 %v2153, %v2152
        %v2213 = vpack.c.b16 %v2155, %v2154
        %v2214 = vpack.c.b16 %v2157, %v2156
        %v2215 = vpack.c.b16 %v2159, %v2158
        %v2216 = vpack.c.b16 %v2161, %v2160
        %v2217 = vpack.c.b16 %v2163, %v2162
        %v2218 = vpack.c.b16 %v2165, %v2164
        %v2219 = vpack.c.b16 %v2167, %v2166
        %v2220 = vpack.c.b16 %v2169, %v2168
        %v2221 = vpack.c.b16 %v2171, %v2170
        %v2222 = vpack.c.b16 %v2173, %v2172
        %v2223 = vpack.c.b16 %v2175, %v2174
        %v2224 = vpack.c.b16 %v2177, %v2176
        %v2225 = vpack.c.b16 %v2179, %v2178
        %v2226 = vpack.c.b16 %v2181, %v2180
        %v2227 = vpack.c.b16 %v2183, %v2182
        %v2228 = vpack.c.b16 %v2185, %v2184
        %v2229 = vpack.c.b16 %v2187, %v2186
        %v2230 = vpack.c.b16 %v2189, %v2188
        %v2231 = vpack.c.b16 %v2191, %v2190
        %v2232 = vpack.c.b16 %v2193, %v2192
        %v2233 = vpack.c.b16 %v2195, %v2194
        %v2234 = vpack.c.b16 %v2197, %v2196
        %v2235 = vpack.c.b16 %v2199, %v2198
        %v2236 = vpack.c.b16 %v2201, %v2200
        %v2237 = vpack.c.b16 %v2203, %v2202
        %v2238 = vpack.c.b16 %v2205, %v2204
        %v2239 = vpack.c.b16 %v2207, %v2206
        %2272 = vmatpush.bf16.msra.mxu0 %v2215
        %2273 = vmatpush.bf16.msra.mxu0 %v2214
        %2274 = vmatpush.bf16.msra.mxu0 %v2213
        %2275 = vmatpush.bf16.msra.mxu0 %v2212
        %2276 = vmatpush.bf16.msra.mxu0 %v2211
        %2277 = vmatpush.bf16.msra.mxu0 %v2210
        %2278 = vmatpush.bf16.msra.mxu0 %v2209
        %2279 = vmatpush.bf16.msra.mxu0 %v2208
        %2280 = vmatmul.bf16.gmra.mxu0 %v1980
        %v2281 = vpop.f32.mrf.mxu0
        %v2282 = vadd.f32 %v2078, %v2281
        %v2283 = vpop.f32.mrf.mxu0
        %v2284 = vadd.f32 %v2078, %v2283
        %2285 = vmatmul.bf16.gmra.mxu0 %v1984
        %v2286 = vpop.f32.mrf.mxu0
        %v2287 = vadd.f32 %v2078, %v2286
        %v2288 = vpop.f32.mrf.mxu0
        %v2289 = vadd.f32 %v2078, %v2288
        %2290 = vmatmul.bf16.gmra.mxu0 %v1988
        %v2291 = vpop.f32.mrf.mxu0
        %v2292 = vadd.f32 %v2078, %v2291
        %v2293 = vpop.f32.mrf.mxu0
        %v2294 = vadd.f32 %v2078, %v2293
        %2295 = vmatmul.bf16.gmra.mxu0 %v1992
        %v2296 = vpop.f32.mrf.mxu0
        %v2297 = vadd.f32 %v2078, %v2296
        %v2298 = vpop.f32.mrf.mxu0
        %v2299 = vadd.f32 %v2078, %v2298
        %2300 = vmatmul.bf16.gmra.mxu0 %v1996
        %v2301 = vpop.f32.mrf.mxu0
        %v2302 = vadd.f32 %v2078, %v2301
        %v2303 = vpop.f32.mrf.mxu0
        %v2304 = vadd.f32 %v2078, %v2303
        %2305 = vmatmul.bf16.gmra.mxu0 %v2000
        %v2306 = vpop.f32.mrf.mxu0
        %v2307 = vadd.f32 %v2078, %v2306
        %v2308 = vpop.f32.mrf.mxu0
        %v2309 = vadd.f32 %v2078, %v2308
        %2310 = vmatmul.bf16.gmra.mxu0 %v2004
        %v2311 = vpop.f32.mrf.mxu0
        %v2312 = vadd.f32 %v2078, %v2311
        %v2313 = vpop.f32.mrf.mxu0
        %v2314 = vadd.f32 %v2078, %v2313
        %2315 = vmatmul.bf16.gmra.mxu0 %v2008
        %v2316 = vpop.f32.mrf.mxu0
        %v2317 = vadd.f32 %v2078, %v2316
        %v2318 = vpop.f32.mrf.mxu0
        %v2319 = vadd.f32 %v2078, %v2318
        %2320 = vdwg.mxu0
        %2321 = vmatpush.bf16.msra.mxu0 %v2223
        %2322 = vmatpush.bf16.msra.mxu0 %v2222
        %2323 = vmatpush.bf16.msra.mxu0 %v2221
        %2324 = vmatpush.bf16.msra.mxu0 %v2220
        %2325 = vmatpush.bf16.msra.mxu0 %v2219
        %2326 = vmatpush.bf16.msra.mxu0 %v2218
        %2327 = vmatpush.bf16.msra.mxu0 %v2217
        %2328 = vmatpush.bf16.msra.mxu0 %v2216
        %2329 = vmatmul.bf16.gmra.mxu0 %v1981
        %v2330 = vpop.f32.mrf.mxu0
        %v2331 = vadd.f32 %v2282, %v2330
        %v2332 = vpop.f32.mrf.mxu0
        %v2333 = vadd.f32 %v2284, %v2332
        %2334 = vmatmul.bf16.gmra.mxu0 %v1985
        %v2335 = vpop.f32.mrf.mxu0
        %v2336 = vadd.f32 %v2287, %v2335
        %v2337 = vpop.f32.mrf.mxu0
        %v2338 = vadd.f32 %v2289, %v2337
        %2339 = vmatmul.bf16.gmra.mxu0 %v1989
        %v2340 = vpop.f32.mrf.mxu0
        %v2341 = vadd.f32 %v2292, %v2340
        %v2342 = vpop.f32.mrf.mxu0
        %v2343 = vadd.f32 %v2294, %v2342
        %2344 = vmatmul.bf16.gmra.mxu0 %v1993
        %v2345 = vpop.f32.mrf.mxu0
        %v2346 = vadd.f32 %v2297, %v2345
        %v2347 = vpop.f32.mrf.mxu0
        %v2348 = vadd.f32 %v2299, %v2347
        %2349 = vmatmul.bf16.gmra.mxu0 %v1997
        %v2350 = vpop.f32.mrf.mxu0
        %v2351 = vadd.f32 %v2302, %v2350
        %v2352 = vpop.f32.mrf.mxu0
        %v2353 = vadd.f32 %v2304, %v2352
        %2354 = vmatmul.bf16.gmra.mxu0 %v2001
        %v2355 = vpop.f32.mrf.mxu0
        %v2356 = vadd.f32 %v2307, %v2355
        %v2357 = vpop.f32.mrf.mxu0
        %v2358 = vadd.f32 %v2309, %v2357
        %2359 = vmatmul.bf16.gmra.mxu0 %v2005
        %v2360 = vpop.f32.mrf.mxu0
        %v2361 = vadd.f32 %v2312, %v2360
        %v2362 = vpop.f32.mrf.mxu0
        %v2363 = vadd.f32 %v2314, %v2362
        %2364 = vmatmul.bf16.gmra.mxu0 %v2009
        %v2365 = vpop.f32.mrf.mxu0
        %v2366 = vadd.f32 %v2317, %v2365
        %v2367 = vpop.f32.mrf.mxu0
        %v2368 = vadd.f32 %v2319, %v2367
        %2369 = vdwg.mxu0
        %2370 = vmatpush.bf16.msra.mxu0 %v2231
        %2371 = vmatpush.bf16.msra.mxu0 %v2230
        %2372 = vmatpush.bf16.msra.mxu0 %v2229
        %2373 = vmatpush.bf16.msra.mxu0 %v2228
        %2374 = vmatpush.bf16.msra.mxu0 %v2227
        %2375 = vmatpush.bf16.msra.mxu0 %v2226
        %2376 = vmatpush.bf16.msra.mxu0 %v2225
        %2377 = vmatpush.bf16.msra.mxu0 %v2224
        %2378 = vmatmul.bf16.gmra.mxu0 %v1982
        %v2379 = vpop.f32.mrf.mxu0
        %v2380 = vadd.f32 %v2331, %v2379
        %v2381 = vpop.f32.mrf.mxu0
        %v2382 = vadd.f32 %v2333, %v2381
        %2383 = vmatmul.bf16.gmra.mxu0 %v1986
        %v2384 = vpop.f32.mrf.mxu0
        %v2385 = vadd.f32 %v2336, %v2384
        %v2386 = vpop.f32.mrf.mxu0
        %v2387 = vadd.f32 %v2338, %v2386
        %2388 = vmatmul.bf16.gmra.mxu0 %v1990
        %v2389 = vpop.f32.mrf.mxu0
        %v2390 = vadd.f32 %v2341, %v2389
        %v2391 = vpop.f32.mrf.mxu0
        %v2392 = vadd.f32 %v2343, %v2391
        %2393 = vmatmul.bf16.gmra.mxu0 %v1994
        %v2394 = vpop.f32.mrf.mxu0
        %v2395 = vadd.f32 %v2346, %v2394
        %v2396 = vpop.f32.mrf.mxu0
        %v2397 = vadd.f32 %v2348, %v2396
        %2398 = vmatmul.bf16.gmra.mxu0 %v1998
        %v2399 = vpop.f32.mrf.mxu0
        %v2400 = vadd.f32 %v2351, %v2399
        %v2401 = vpop.f32.mrf.mxu0
        %v2402 = vadd.f32 %v2353, %v2401
        %2403 = vmatmul.bf16.gmra.mxu0 %v2002
        %v2404 = vpop.f32.mrf.mxu0
        %v2405 = vadd.f32 %v2356, %v2404
        %v2406 = vpop.f32.mrf.mxu0
        %v2407 = vadd.f32 %v2358, %v2406
        %2408 = vmatmul.bf16.gmra.mxu0 %v2006
        %v2409 = vpop.f32.mrf.mxu0
        %v2410 = vadd.f32 %v2361, %v2409
        %v2411 = vpop.f32.mrf.mxu0
        %v2412 = vadd.f32 %v2363, %v2411
        %2413 = vmatmul.bf16.gmra.mxu0 %v2010
        %v2414 = vpop.f32.mrf.mxu0
        %v2415 = vadd.f32 %v2366, %v2414
        %v2416 = vpop.f32.mrf.mxu0
        %v2417 = vadd.f32 %v2368, %v2416
        %2418 = vdwg.mxu0
        %2419 = vmatpush.bf16.msra.mxu0 %v2239
        %2420 = vmatpush.bf16.msra.mxu0 %v2238
        %2421 = vmatpush.bf16.msra.mxu0 %v2237
        %2422 = vmatpush.bf16.msra.mxu0 %v2236
        %2423 = vmatpush.bf16.msra.mxu0 %v2235
        %2424 = vmatpush.bf16.msra.mxu0 %v2234
        %2425 = vmatpush.bf16.msra.mxu0 %v2233
        %2426 = vmatpush.bf16.msra.mxu0 %v2232
        %2427 = vmatmul.bf16.gmra.mxu0 %v1983
        %v2428 = vpop.f32.mrf.mxu0
        %v2429 = vadd.f32 %v2380, %v2428
        %v2430 = vpop.f32.mrf.mxu0
        %v2431 = vadd.f32 %v2382, %v2430
        %2432 = vmatmul.bf16.gmra.mxu0 %v1987
        %v2433 = vpop.f32.mrf.mxu0
        %v2434 = vadd.f32 %v2385, %v2433
        %v2435 = vpop.f32.mrf.mxu0
        %v2436 = vadd.f32 %v2387, %v2435
        %2437 = vmatmul.bf16.gmra.mxu0 %v1991
        %v2438 = vpop.f32.mrf.mxu0
        %v2439 = vadd.f32 %v2390, %v2438
        %v2440 = vpop.f32.mrf.mxu0
        %v2441 = vadd.f32 %v2392, %v2440
        %2442 = vmatmul.bf16.gmra.mxu0 %v1995
        %v2443 = vpop.f32.mrf.mxu0
        %v2444 = vadd.f32 %v2395, %v2443
        %v2445 = vpop.f32.mrf.mxu0
        %v2446 = vadd.f32 %v2397, %v2445
        %2447 = vmatmul.bf16.gmra.mxu0 %v1999
        %v2448 = vpop.f32.mrf.mxu0
        %v2449 = vadd.f32 %v2400, %v2448
        %v2450 = vpop.f32.mrf.mxu0
        %v2451 = vadd.f32 %v2402, %v2450
        %2452 = vmatmul.bf16.gmra.mxu0 %v2003
        %v2453 = vpop.f32.mrf.mxu0
        %v2454 = vadd.f32 %v2405, %v2453
        %v2455 = vpop.f32.mrf.mxu0
        %v2456 = vadd.f32 %v2407, %v2455
        %2457 = vmatmul.bf16.gmra.mxu0 %v2007
        %v2458 = vpop.f32.mrf.mxu0
        %v2459 = vadd.f32 %v2410, %v2458
        %v2460 = vpop.f32.mrf.mxu0
        %v2461 = vadd.f32 %v2412, %v2460
        %2462 = vmatmul.bf16.gmra.mxu0 %v2011
        %v2463 = vpop.f32.mrf.mxu0
        %v2464 = vadd.f32 %v2415, %v2463
        %v2465 = vpop.f32.mrf.mxu0
        %v2466 = vadd.f32 %v2417, %v2465
        %2467 = vdwg.mxu0
        %2468 = vst [vmem:[%s235] sm:$0xff] %v2429
        %2469 = vst [vmem:[%s235 + $0x8] sm:$0xff] %v2431
        %2470 = vst [vmem:[%s235 + $0x10] sm:$0xff] %v2434
        %2471 = vst [vmem:[%s235 + $0x18] sm:$0xff] %v2436
        %2472 = vst [vmem:[%s235 + $0x20] sm:$0xff] %v2439
        %2473 = vst [vmem:[%s235 + $0x28] sm:$0xff] %v2441
        %2474 = vst [vmem:[%s235 + $0x30] sm:$0xff] %v2444
        %2475 = vst [vmem:[%s235 + $0x38] sm:$0xff] %v2446
        %2476 = vst [vmem:[%s235 + $0x40] sm:$0xff] %v2449
        %2477 = vst [vmem:[%s235 + $0x48] sm:$0xff] %v2451
        %2478 = vst [vmem:[%s235 + $0x50] sm:$0xff] %v2454
        %2479 = vst [vmem:[%s235 + $0x58] sm:$0xff] %v2456
        %2480 = vst [vmem:[%s235 + $0x60] sm:$0xff] %v2459
        %2481 = vst [vmem:[%s235 + $0x68] sm:$0xff] %v2461
        %2482 = vst [vmem:[%s235 + $0x70] sm:$0xff] %v2464
        %2483 = vst [vmem:[%s235 + $0x78] sm:$0xff] %v2466
        %s2484 = sand.u32 %s137, 1
        %s2485 = scalar_lea.sflag [#allocation3], %s2484
        %s2486 = sand.u32 %s137, 1
        %s2487 = smul.addr %s2486, 128
        %s2488 = scalar_lea.vmem [#allocation2], %s2487
        // Predicated region
        $region41: #{projector_forward.1} parent=39 // pred_check
          %p2489 = pneg %p147
        $region42: #{projector_forward.1} parent=39 // pred_check_branch
          %2491 = sbr.rel (%p2489) target = $region44
        $region43: #{projector_forward.1} parent=39 // pred_region
          %s2492 = smul.u32 16, %s19
          %s2493 = ssub.s32 25, %s2492
          %p2494 = scmp.lt.s32.totalorder %s2493, 16
          %s2495 = scalar_select %p2494, %s2493, 16
          %s2496 = smul.u32 8, %s2495
          %s2497 = ssub.s32 128, %s2496
          %s2498 = sshll.u32 %s2497, 4
          %2499 = vsyncadd %s2485, %s2498
          %p2500 = scmp.ne.s32.totalorder 0, %s2496
          %s2501 = smul.addr %s2492, 8
          %s2502 = scalar_lea.hbm %s5, %s2501
          %s2503 = smul.u32 8, %s2495
          %s2504 = sshll.u32 %s2488, 4
          %s2505 = int_to_ptr.vmem [resolvable:$true] %s2504
          %s2506 = sshll.u32 %s2502, 4
          %s2507 = int_to_ptr.hbm [resolvable:$true] %s2506
          %s2508 = sshll.u32 %s2503, 4
          %2512 = dma.vmem_to_hbm [thread:$0]  (%p2500), %s2505, %s2508, %s2507, %s2485, 128, 128, 8
        $region44: #{projector_forward.1} parent=39 // pred_fallthru
          _
      $region40: #{projector_forward.1} parent=5 // pred_fallthru
        _
      %p2513 = scmp.le.s32.totalorder 2, %s14
      // Predicated region
      $region45: #{projector_forward.1} parent=5 // pred_check
        %p2514 = pneg %p2513
      $region46: #{projector_forward.1} parent=5 // pred_check_branch
        %2516 = sbr.rel (%p2514) target = $region48
      $region47: #{projector_forward.1} parent=5 // pred_region
        %s2517 = ssub.s32 %s14, 2
        // Predicated region
        $region49: #{projector_forward.1} parent=47 // pred_check
          %p2518 = pneg %p153
        $region50: #{projector_forward.1} parent=47 // pred_check_branch
          %2520 = sbr.rel (%p2518) target = $region52
        $region51: #{projector_forward.1} parent=47 // pred_region
          %s2521 = sand.u32 %s138, 1
          %s2522 = scalar_lea.sflag [#allocation3], %s2521
          %s2523 = sand.u32 %s138, 1
          %s2524 = smul.addr %s2523, 128
          %s2525 = scalar_lea.vmem [#allocation2], %s2524
          %2527 = dma.done %s2522, 2048
        $region52: #{projector_forward.1} parent=47 // pred_fallthru
          _
      $region48: #{projector_forward.1} parent=5 // pred_fallthru
        _
    $region6: #{projector_forward.1} parent=1 // loop_footer
      %s18 = sadd.s32 1, %s14
    $region7: #{projector_forward.1} parent=1 // loop_footer_branch
      %13 = sbr.rel target = $region3
    $region8: #{projector_forward.1} parent=1 // loop_exit
      _
    %2528 = vsyncpa [#allocation3], 1
    %s2529 = scalar_lea.sflag [#allocation3], 1
    %2530 = vsyncpa %s2529, 1

</llo_original>
